<compile_context>
chip_gen: v5e
topology: v5e:2x2
jax: 0.10.0
libtpu: 0.0.40
codegen_flags: <defaults>
</compile_context>

<pallas_src>
import functools

import jax
import jax.numpy as jnp
from jax.experimental import pallas as pl
from jax.experimental.pallas import tpu as pltpu


def _layernorm(x, gamma, beta, eps=1e-5):
    # x: (M, C) f32; gamma/beta: (1, C) f32
    mu = jnp.mean(x, axis=-1, keepdims=True)
    xc = x - mu
    var = jnp.mean(xc * xc, axis=-1, keepdims=True)
    return xc * jax.lax.rsqrt(var + eps) * gamma + beta


def _gelu_exact(x):
    # nn.GELU default is the exact (erf) variant; keep in f32.
    return 0.5 * x * (1.0 + jax.lax.erf(x * 0.7071067811865476))


def vit_block_kernel(num_heads,
                     x_ref, ln1_g_ref, ln1_b_ref,
                     wqkv_ref, wproj_ref, bproj_ref,
                     ln2_g_ref, ln2_b_ref,
                     w1_ref, b1_ref, w2_ref, b2_ref,
                     o_ref):
    Bblk, N, C = x_ref.shape
    BN = Bblk * N
    hd = C // num_heads
    scale = float(hd) ** -0.5

    # ---- hoisted loads: bf16 weights, f32 biases / LN params ----
    ln1_g = ln1_g_ref[...]
    ln1_b = ln1_b_ref[...]
    ln2_g = ln2_g_ref[...]
    ln2_b = ln2_b_ref[...]
    wqkv = wqkv_ref[...]                     # (C, 3C)            bf16
    wproj = wproj_ref[...]                   # (num_heads, hd, C) bf16
    bproj = bproj_ref[...]                   # (1, C)             f32
    w1 = w1_ref[...]                         # (C, H)             bf16
    b1 = b1_ref[...]                         # (1, H)             f32
    w2 = w2_ref[...]                         # (H, C)             bf16
    b2 = b2_ref[...]                         # (1, C)             f32

    # Fold batch into M for all dense matmuls.
    x = x_ref[...].reshape(BN, C)            # (BN, C) f32

    # ---------------- attention branch ----------------
    xn = _layernorm(x, ln1_g, ln1_b)
    qkv = jnp.dot(xn.astype(jnp.bfloat16), wqkv,
                  preferred_element_type=jnp.float32)            # (BN, 3C) f32

    attn_acc = jnp.zeros((BN, C), jnp.float32)
    for h in range(num_heads):               # small static loop over heads
        lo = h * hd
        # Fold the softmax scale into q (cheap: (BN, hd) vs (Bblk, N, N)).
        qh = (qkv[:, lo:lo + hd] * scale).reshape(Bblk, N, hd).astype(jnp.bfloat16)
        kh = qkv[:, C + lo:C + lo + hd].reshape(Bblk, N, hd).astype(jnp.bfloat16)
        vh = qkv[:, 2 * C + lo:2 * C + lo + hd].reshape(Bblk, N, hd).astype(jnp.bfloat16)

        # Batched (over Bblk) scores + softmax, f32 softmax math.
        s = jnp.einsum('bqd,bkd->bqk', qh, kh,
                       preferred_element_type=jnp.float32)           # (Bblk,N,N)
        s = s - jnp.max(s, axis=-1, keepdims=True)
        p = jnp.exp(s)
        p = p * pl.reciprocal(jnp.sum(p, axis=-1, keepdims=True), approx=True)

        oh = jnp.einsum('bqk,bkd->bqd', p.astype(jnp.bfloat16), vh,
                        preferred_element_type=jnp.float32)          # (Bblk,N,hd)

        # Fold the head-concat into the output projection: accumulate o_h @ Wproj_h.
        attn_acc = attn_acc + jnp.dot(oh.reshape(BN, hd).astype(jnp.bfloat16),
                                      wproj[h],
                                      preferred_element_type=jnp.float32)

    x = x + attn_acc + bproj                                         # residual 1

    # ---------------- MLP branch ----------------
    xn2 = _layernorm(x, ln2_g, ln2_b)
    h1 = jnp.dot(xn2.astype(jnp.bfloat16), w1,
                 preferred_element_type=jnp.float32) + b1
    h1 = _gelu_exact(h1)
    h2 = jnp.dot(h1.astype(jnp.bfloat16), w2,
                 preferred_element_type=jnp.float32) + b2
    o_ref[...] = (x + h2).reshape(Bblk, N, C).astype(o_ref.dtype)    # residual 2


def vit_block(x, params, num_heads, bblk=None):
    B, N, C = x.shape
    H = params["w1"].shape[1]
    assert C % num_heads == 0
    hd = C // num_heads

    # Fold enough batch elements per grid step to give the MXU a decent M.
    if bblk is None:
        bblk = max(1, min(B, pl.cdiv(256, N)))
        while B % bblk:
            bblk -= 1
    assert B % bblk == 0
    grid = (B // bblk,)

    bf16 = jnp.bfloat16
    wqkv = params["wqkv"].astype(bf16)                                  # (C, 3C)
    wproj = params["wproj"].reshape(num_heads, hd, C).astype(bf16)      # (h, hd, C)
    w1 = params["w1"].astype(bf16)                                      # (C, H)
    w2 = params["w2"].astype(bf16)                                      # (H, C)

    def rep(shape):
        nd = len(shape)
        return pl.BlockSpec(shape, lambda b, _nd=nd: (0,) * _nd)

    in_specs = [
        pl.BlockSpec((bblk, N, C), lambda b: (b, 0, 0)),   # x
        rep((1, C)), rep((1, C)),                          # ln1 gamma/beta
        rep((C, 3 * C)),                                   # qkv weight (bf16)
        rep((num_heads, hd, C)), rep((1, C)),              # proj weight (bf16) / bias
        rep((1, C)), rep((1, C)),                          # ln2 gamma/beta
        rep((C, H)), rep((1, H)),                          # fc1 weight (bf16) / bias
        rep((H, C)), rep((1, C)),                          # fc2 weight (bf16) / bias
    ]

    return pl.pallas_call(
        functools.partial(vit_block_kernel, num_heads),
        out_shape=jax.ShapeDtypeStruct((B, N, C), x.dtype),
        grid=grid,
        in_specs=in_specs,
        out_specs=pl.BlockSpec((bblk, N, C), lambda b: (b, 0, 0)),
        compiler_params=pltpu.CompilerParams(
            dimension_semantics=("parallel",),
            vmem_limit_bytes=48 * 1024 * 1024,
        ),
    )(x, params["ln1_g"], params["ln1_b"],
      wqkv, wproj, params["bproj"],
      params["ln2_g"], params["ln2_b"],
      w1, params["b1"], w2, params["b2"])


def _reference_block(x, p, num_heads):
    # Pure-JAX f32 reference (same math as the PyTorch module).
    B, N, C = x.shape
    hd = C // num_heads
    scale = hd ** -0.5

    def ln(v, g, b, eps=1e-5):
        mu = v.mean(-1, keepdims=True)
        var = ((v - mu) ** 2).mean(-1, keepdims=True)
        return (v - mu) / jnp.sqrt(var + eps) * g + b

    xn = ln(x, p["ln1_g"], p["ln1_b"])
    qkv = xn @ p["wqkv"]                                          # (B,N,3C)
    qkv = qkv.reshape(B, N, 3, num_heads, hd).transpose(2, 0, 3, 1, 4)
    q, k, v = qkv[0], qkv[1], qkv[2]                              # (B,h,N,hd)
    s = jnp.einsum("bhqd,bhkd->bhqk", q, k) * scale
    a = jax.nn.softmax(s, axis=-1)
    o = jnp.einsum("bhqk,bhkd->bhqd", a, v).transpose(0, 2, 1, 3).reshape(B, N, C)
    x = x + o @ p["wproj"] + p["bproj"]

    xn2 = ln(x, p["ln2_g"], p["ln2_b"])
    h = jax.nn.gelu(xn2 @ p["w1"] + p["b1"], approximate=False)
    return x + h @ p["w2"] + p["b2"]


if __name__ == "__main__":
    # Small but lane-dense config: C multiple of 128, H = 4*C.
    B, N, C = 2, 8, 128
    num_heads = 4
    H = int(C * 4.0)

    key = jax.random.PRNGKey(0)
    ks = jax.random.split(key, 8)

    params = {
        "ln1_g": jnp.ones((1, C), jnp.float32),
        "ln1_b": jnp.zeros((1, C), jnp.float32),
        "wqkv": 0.02 * jax.random.normal(ks[0], (C, 3 * C), jnp.float32),
        "wproj": 0.02 * jax.random.normal(ks[1], (C, C), jnp.float32),
        "bproj": 0.02 * jax.random.normal(ks[2], (1, C), jnp.float32),
        "ln2_g": jnp.ones((1, C), jnp.float32),
        "ln2_b": jnp.zeros((1, C), jnp.float32),
        "w1": 0.02 * jax.random.normal(ks[3], (C, H), jnp.float32),
        "b1": 0.02 * jax.random.normal(ks[4], (1, H), jnp.float32),
        "w2": 0.02 * jax.random.normal(ks[5], (H, C), jnp.float32),
        "b2": 0.02 * jax.random.normal(ks[6], (1, C), jnp.float32),
    }
    x = jax.random.normal(ks[7], (B, N, C), jnp.float32)

    out = vit_block(x, params, num_heads)
    out = jax.block_until_ready(out)

    ref = _reference_block(x, params, num_heads)
    assert out.shape == (B, N, C)
    # bf16 MXU operands loosen the tolerance vs the pure-f32 reference.
    assert jnp.allclose(out, ref, atol=2e-2, rtol=2e-2), (
        "mismatch vs reference, max abs err = %g"
        % float(jnp.max(jnp.abs(out - ref))))

    print("KERNEL_OK")
</pallas_src>

<mosaic_0001>
module attributes {stable_mosaic.version = 11 : i64} {
  func.func @vit_block_kernel(%arg0: i32, %arg1: memref<2x8x128xf32, #tpu.memory_space<vmem>>, %arg2: memref<1x128xf32, #tpu.memory_space<vmem>>, %arg3: memref<1x128xf32, #tpu.memory_space<vmem>>, %arg4: memref<128x384xbf16, #tpu.memory_space<vmem>>, %arg5: memref<4x32x128xbf16, #tpu.memory_space<vmem>>, %arg6: memref<1x128xf32, #tpu.memory_space<vmem>>, %arg7: memref<1x128xf32, #tpu.memory_space<vmem>>, %arg8: memref<1x128xf32, #tpu.memory_space<vmem>>, %arg9: memref<128x512xbf16, #tpu.memory_space<vmem>>, %arg10: memref<1x512xf32, #tpu.memory_space<vmem>>, %arg11: memref<512x128xbf16, #tpu.memory_space<vmem>>, %arg12: memref<1x128xf32, #tpu.memory_space<vmem>>, %arg13: memref<2x8x128xf32, #tpu.memory_space<vmem>>) attributes {dimension_semantics = [#tpu.dimension_semantics<parallel>], iteration_bounds = array<i64: 1>, scalar_prefetch = 0 : i64, scratch_operands = 0 : i64, tpu.core_type = #tpu.core_type<tc>, window_params = [{transform_indices = @transform_0, window_bounds = array<i64: 2, 8, 128>}, {pipeline_mode = #tpu.pipeline_mode<synchronous>, transform_indices = @transform_1, window_bounds = array<i64: 1, 128>}, {pipeline_mode = #tpu.pipeline_mode<synchronous>, transform_indices = @transform_2, window_bounds = array<i64: 1, 128>}, {pipeline_mode = #tpu.pipeline_mode<synchronous>, transform_indices = @transform_3, window_bounds = array<i64: 128, 384>}, {pipeline_mode = #tpu.pipeline_mode<synchronous>, transform_indices = @transform_4, window_bounds = array<i64: 4, 32, 128>}, {pipeline_mode = #tpu.pipeline_mode<synchronous>, transform_indices = @transform_5, window_bounds = array<i64: 1, 128>}, {pipeline_mode = #tpu.pipeline_mode<synchronous>, transform_indices = @transform_6, window_bounds = array<i64: 1, 128>}, {pipeline_mode = #tpu.pipeline_mode<synchronous>, transform_indices = @transform_7, window_bounds = array<i64: 1, 128>}, {pipeline_mode = #tpu.pipeline_mode<synchronous>, transform_indices = @transform_8, window_bounds = array<i64: 128, 512>}, {pipeline_mode = #tpu.pipeline_mode<synchronous>, transform_indices = @transform_9, window_bounds = array<i64: 1, 512>}, {pipeline_mode = #tpu.pipeline_mode<synchronous>, transform_indices = @transform_10, window_bounds = array<i64: 512, 128>}, {pipeline_mode = #tpu.pipeline_mode<synchronous>, transform_indices = @transform_11, window_bounds = array<i64: 1, 128>}, {transform_indices = @transform_12, window_bounds = array<i64: 2, 8, 128>}]} {
    %c0 = arith.constant 0 : index
    %c0_0 = arith.constant 0 : index
    %0 = vector.load %arg2[%c0, %c0_0] : memref<1x128xf32, #tpu.memory_space<vmem>>, vector<1x128xf32>
    %c0_1 = arith.constant 0 : index
    %c0_2 = arith.constant 0 : index
    %1 = vector.load %arg3[%c0_1, %c0_2] : memref<1x128xf32, #tpu.memory_space<vmem>>, vector<1x128xf32>
    %c0_3 = arith.constant 0 : index
    %c0_4 = arith.constant 0 : index
    %2 = vector.load %arg7[%c0_3, %c0_4] : memref<1x128xf32, #tpu.memory_space<vmem>>, vector<1x128xf32>
    %c0_5 = arith.constant 0 : index
    %c0_6 = arith.constant 0 : index
    %3 = vector.load %arg8[%c0_5, %c0_6] : memref<1x128xf32, #tpu.memory_space<vmem>>, vector<1x128xf32>
    %c0_7 = arith.constant 0 : index
    %c0_8 = arith.constant 0 : index
    %4 = vector.load %arg4[%c0_7, %c0_8] : memref<128x384xbf16, #tpu.memory_space<vmem>>, vector<128x384xbf16>
    %c0_9 = arith.constant 0 : index
    %c0_10 = arith.constant 0 : index
    %c0_11 = arith.constant 0 : index
    %5 = vector.load %arg5[%c0_9, %c0_10, %c0_11] : memref<4x32x128xbf16, #tpu.memory_space<vmem>>, vector<4x32x128xbf16>
    %c0_12 = arith.constant 0 : index
    %c0_13 = arith.constant 0 : index
    %6 = vector.load %arg6[%c0_12, %c0_13] : memref<1x128xf32, #tpu.memory_space<vmem>>, vector<1x128xf32>
    %c0_14 = arith.constant 0 : index
    %c0_15 = arith.constant 0 : index
    %7 = vector.load %arg9[%c0_14, %c0_15] : memref<128x512xbf16, #tpu.memory_space<vmem>>, vector<128x512xbf16>
    %c0_16 = arith.constant 0 : index
    %c0_17 = arith.constant 0 : index
    %8 = vector.load %arg10[%c0_16, %c0_17] : memref<1x512xf32, #tpu.memory_space<vmem>>, vector<1x512xf32>
    %c0_18 = arith.constant 0 : index
    %c0_19 = arith.constant 0 : index
    %9 = vector.load %arg11[%c0_18, %c0_19] : memref<512x128xbf16, #tpu.memory_space<vmem>>, vector<512x128xbf16>
    %c0_20 = arith.constant 0 : index
    %c0_21 = arith.constant 0 : index
    %10 = vector.load %arg12[%c0_20, %c0_21] : memref<1x128xf32, #tpu.memory_space<vmem>>, vector<1x128xf32>
    %c0_22 = arith.constant 0 : index
    %c0_23 = arith.constant 0 : index
    %c0_24 = arith.constant 0 : index
    %11 = vector.load %arg1[%c0_22, %c0_23, %c0_24] : memref<2x8x128xf32, #tpu.memory_space<vmem>>, vector<2x8x128xf32>
    %12 = vector.shape_cast %11 : vector<2x8x128xf32> to vector<16x128xf32>
    %cst = arith.constant dense<0.000000e+00> : vector<16xf32>
    %13 = vector.multi_reduction <add>, %12, %cst [1] : vector<16x128xf32> to vector<16xf32>
    %14 = vector.shape_cast %13 : vector<16xf32> to vector<16x1xf32>
    %cst_25 = arith.constant 1.280000e+02 : f32
    %15 = vector.broadcast %cst_25 : f32 to vector<16x1xf32>
    %16 = arith.divf %14, %15 : vector<16x1xf32>
    %17 = vector.broadcast %16 : vector<16x1xf32> to vector<16x128xf32>
    %18 = arith.subf %12, %17 : vector<16x128xf32>
    %19 = arith.mulf %18, %18 : vector<16x128xf32>
    %cst_26 = arith.constant dense<0.000000e+00> : vector<16xf32>
    %20 = vector.multi_reduction <add>, %19, %cst_26 [1] : vector<16x128xf32> to vector<16xf32>
    %21 = vector.shape_cast %20 : vector<16xf32> to vector<16x1xf32>
    %cst_27 = arith.constant 1.280000e+02 : f32
    %22 = vector.broadcast %cst_27 : f32 to vector<16x1xf32>
    %23 = arith.divf %21, %22 : vector<16x1xf32>
    %cst_28 = arith.constant 9.99999974E-6 : f32
    %24 = vector.broadcast %cst_28 : f32 to vector<16x1xf32>
    %25 = arith.addf %23, %24 : vector<16x1xf32>
    %26 = math.rsqrt %25 : vector<16x1xf32>
    %27 = vector.broadcast %26 : vector<16x1xf32> to vector<16x128xf32>
    %28 = arith.mulf %18, %27 : vector<16x128xf32>
    %29 = vector.broadcast %0 : vector<1x128xf32> to vector<16x128xf32>
    %30 = arith.mulf %28, %29 : vector<16x128xf32>
    %31 = vector.broadcast %1 : vector<1x128xf32> to vector<16x128xf32>
    %32 = arith.addf %30, %31 : vector<16x128xf32>
    %33 = arith.truncf %32 : vector<16x128xf32> to vector<16x128xbf16>
    %cst_29 = arith.constant dense<0.000000e+00> : vector<16x384xf32>
    %34 = tpu.matmul %33, %4, %cst_29 {dimension_numbers = #tpu.dot_dimension_numbers<[1], [0], [0], [1], [0, 0, 1, 1], [], []>} : vector<16x128xbf16>, vector<128x384xbf16>, vector<16x384xf32> -> vector<16x384xf32>
    %cst_30 = arith.constant 0.000000e+00 : f32
    %35 = vector.broadcast %cst_30 : f32 to vector<16x128xf32>
    %36 = vector.extract_strided_slice %34 {offsets = [0, 0], sizes = [16, 32], strides = [1, 1]} : vector<16x384xf32> to vector<16x32xf32>
    %cst_31 = arith.constant 0.176776692 : f32
    %37 = vector.broadcast %cst_31 : f32 to vector<16x32xf32>
    %38 = arith.mulf %36, %37 : vector<16x32xf32>
    %39 = vector.shape_cast %38 : vector<16x32xf32> to vector<2x8x32xf32>
    %40 = arith.truncf %39 : vector<2x8x32xf32> to vector<2x8x32xbf16>
    %41 = vector.extract_strided_slice %34 {offsets = [0, 128], sizes = [16, 32], strides = [1, 1]} : vector<16x384xf32> to vector<16x32xf32>
    %42 = vector.shape_cast %41 : vector<16x32xf32> to vector<2x8x32xf32>
    %43 = arith.truncf %42 : vector<2x8x32xf32> to vector<2x8x32xbf16>
    %44 = vector.extract_strided_slice %34 {offsets = [0, 256], sizes = [16, 32], strides = [1, 1]} : vector<16x384xf32> to vector<16x32xf32>
    %45 = vector.shape_cast %44 : vector<16x32xf32> to vector<2x8x32xf32>
    %46 = arith.truncf %45 : vector<2x8x32xf32> to vector<2x8x32xbf16>
    "tpu.trace_start"() <{level = 10 : i32, message = "bqd,bkd->bqk"}> : () -> ()
    %cst_32 = arith.constant dense<0.000000e+00> : vector<2x8x8xf32>
    %47 = tpu.matmul %40, %43, %cst_32 {dimension_numbers = #tpu.dot_dimension_numbers<[2], [2], [1], [1], [0, 0, 0, 1, 1, 1], [0], [0]>} : vector<2x8x32xbf16>, vector<2x8x32xbf16>, vector<2x8x8xf32> -> vector<2x8x8xf32>
    "tpu.trace_stop"() : () -> ()
    %cst_33 = arith.constant dense<0xFF800000> : vector<2x8xf32>
    %48 = vector.multi_reduction <maximumf>, %47, %cst_33 [2] : vector<2x8x8xf32> to vector<2x8xf32>
    %49 = vector.shape_cast %48 : vector<2x8xf32> to vector<2x8x1xf32>
    %50 = vector.broadcast %49 : vector<2x8x1xf32> to vector<2x8x8xf32>
    %51 = arith.subf %47, %50 : vector<2x8x8xf32>
    %52 = math.exp %51 : vector<2x8x8xf32>
    %cst_34 = arith.constant dense<0.000000e+00> : vector<2x8xf32>
    %53 = vector.multi_reduction <add>, %52, %cst_34 [2] : vector<2x8x8xf32> to vector<2x8xf32>
    %54 = vector.shape_cast %53 : vector<2x8xf32> to vector<2x8x1xf32>
    %55 = tpu.reciprocal %54 {approx = true} : vector<2x8x1xf32> -> vector<2x8x1xf32>
    %56 = vector.broadcast %55 : vector<2x8x1xf32> to vector<2x8x8xf32>
    %57 = arith.mulf %52, %56 : vector<2x8x8xf32>
    %58 = arith.truncf %57 : vector<2x8x8xf32> to vector<2x8x8xbf16>
    "tpu.trace_start"() <{level = 10 : i32, message = "bqk,bkd->bqd"}> : () -> ()
    %cst_35 = arith.constant dense<0.000000e+00> : vector<2x8x32xf32>
    %59 = tpu.matmul %58, %46, %cst_35 {dimension_numbers = #tpu.dot_dimension_numbers<[2], [1], [1], [2], [0, 0, 0, 1, 1, 2], [0], [0]>} : vector<2x8x8xbf16>, vector<2x8x32xbf16>, vector<2x8x32xf32> -> vector<2x8x32xf32>
    "tpu.trace_stop"() : () -> ()
    %60 = vector.shape_cast %59 : vector<2x8x32xf32> to vector<16x32xf32>
    %61 = arith.truncf %60 : vector<16x32xf32> to vector<16x32xbf16>
    %62 = vector.extract_strided_slice %5 {offsets = [0, 0, 0], sizes = [1, 32, 128], strides = [1, 1, 1]} : vector<4x32x128xbf16> to vector<1x32x128xbf16>
    %63 = vector.shape_cast %62 : vector<1x32x128xbf16> to vector<32x128xbf16>
    %cst_36 = arith.constant dense<0.000000e+00> : vector<16x128xf32>
    %64 = tpu.matmul %61, %63, %cst_36 {dimension_numbers = #tpu.dot_dimension_numbers<[1], [0], [0], [1], [0, 0, 1, 1], [], []>} : vector<16x32xbf16>, vector<32x128xbf16>, vector<16x128xf32> -> vector<16x128xf32>
    %65 = arith.addf %35, %64 : vector<16x128xf32>
    %66 = vector.extract_strided_slice %34 {offsets = [0, 32], sizes = [16, 32], strides = [1, 1]} : vector<16x384xf32> to vector<16x32xf32>
    %cst_37 = arith.constant 0.176776692 : f32
    %67 = vector.broadcast %cst_37 : f32 to vector<16x32xf32>
    %68 = arith.mulf %66, %67 : vector<16x32xf32>
    %69 = vector.shape_cast %68 : vector<16x32xf32> to vector<2x8x32xf32>
    %70 = arith.truncf %69 : vector<2x8x32xf32> to vector<2x8x32xbf16>
    %71 = vector.extract_strided_slice %34 {offsets = [0, 160], sizes = [16, 32], strides = [1, 1]} : vector<16x384xf32> to vector<16x32xf32>
    %72 = vector.shape_cast %71 : vector<16x32xf32> to vector<2x8x32xf32>
    %73 = arith.truncf %72 : vector<2x8x32xf32> to vector<2x8x32xbf16>
    %74 = vector.extract_strided_slice %34 {offsets = [0, 288], sizes = [16, 32], strides = [1, 1]} : vector<16x384xf32> to vector<16x32xf32>
    %75 = vector.shape_cast %74 : vector<16x32xf32> to vector<2x8x32xf32>
    %76 = arith.truncf %75 : vector<2x8x32xf32> to vector<2x8x32xbf16>
    "tpu.trace_start"() <{level = 10 : i32, message = "bqd,bkd->bqk"}> : () -> ()
    %cst_38 = arith.constant dense<0.000000e+00> : vector<2x8x8xf32>
    %77 = tpu.matmul %70, %73, %cst_38 {dimension_numbers = #tpu.dot_dimension_numbers<[2], [2], [1], [1], [0, 0, 0, 1, 1, 1], [0], [0]>} : vector<2x8x32xbf16>, vector<2x8x32xbf16>, vector<2x8x8xf32> -> vector<2x8x8xf32>
    "tpu.trace_stop"() : () -> ()
    %cst_39 = arith.constant dense<0xFF800000> : vector<2x8xf32>
    %78 = vector.multi_reduction <maximumf>, %77, %cst_39 [2] : vector<2x8x8xf32> to vector<2x8xf32>
    %79 = vector.shape_cast %78 : vector<2x8xf32> to vector<2x8x1xf32>
    %80 = vector.broadcast %79 : vector<2x8x1xf32> to vector<2x8x8xf32>
    %81 = arith.subf %77, %80 : vector<2x8x8xf32>
    %82 = math.exp %81 : vector<2x8x8xf32>
    %cst_40 = arith.constant dense<0.000000e+00> : vector<2x8xf32>
    %83 = vector.multi_reduction <add>, %82, %cst_40 [2] : vector<2x8x8xf32> to vector<2x8xf32>
    %84 = vector.shape_cast %83 : vector<2x8xf32> to vector<2x8x1xf32>
    %85 = tpu.reciprocal %84 {approx = true} : vector<2x8x1xf32> -> vector<2x8x1xf32>
    %86 = vector.broadcast %85 : vector<2x8x1xf32> to vector<2x8x8xf32>
    %87 = arith.mulf %82, %86 : vector<2x8x8xf32>
    %88 = arith.truncf %87 : vector<2x8x8xf32> to vector<2x8x8xbf16>
    "tpu.trace_start"() <{level = 10 : i32, message = "bqk,bkd->bqd"}> : () -> ()
    %cst_41 = arith.constant dense<0.000000e+00> : vector<2x8x32xf32>
    %89 = tpu.matmul %88, %76, %cst_41 {dimension_numbers = #tpu.dot_dimension_numbers<[2], [1], [1], [2], [0, 0, 0, 1, 1, 2], [0], [0]>} : vector<2x8x8xbf16>, vector<2x8x32xbf16>, vector<2x8x32xf32> -> vector<2x8x32xf32>
    "tpu.trace_stop"() : () -> ()
    %90 = vector.shape_cast %89 : vector<2x8x32xf32> to vector<16x32xf32>
    %91 = arith.truncf %90 : vector<16x32xf32> to vector<16x32xbf16>
    %92 = vector.extract_strided_slice %5 {offsets = [1, 0, 0], sizes = [1, 32, 128], strides = [1, 1, 1]} : vector<4x32x128xbf16> to vector<1x32x128xbf16>
    %93 = vector.shape_cast %92 : vector<1x32x128xbf16> to vector<32x128xbf16>
    %cst_42 = arith.constant dense<0.000000e+00> : vector<16x128xf32>
    %94 = tpu.matmul %91, %93, %cst_42 {dimension_numbers = #tpu.dot_dimension_numbers<[1], [0], [0], [1], [0, 0, 1, 1], [], []>} : vector<16x32xbf16>, vector<32x128xbf16>, vector<16x128xf32> -> vector<16x128xf32>
    %95 = arith.addf %65, %94 : vector<16x128xf32>
    %96 = vector.extract_strided_slice %34 {offsets = [0, 64], sizes = [16, 32], strides = [1, 1]} : vector<16x384xf32> to vector<16x32xf32>
    %cst_43 = arith.constant 0.176776692 : f32
    %97 = vector.broadcast %cst_43 : f32 to vector<16x32xf32>
    %98 = arith.mulf %96, %97 : vector<16x32xf32>
    %99 = vector.shape_cast %98 : vector<16x32xf32> to vector<2x8x32xf32>
    %100 = arith.truncf %99 : vector<2x8x32xf32> to vector<2x8x32xbf16>
    %101 = vector.extract_strided_slice %34 {offsets = [0, 192], sizes = [16, 32], strides = [1, 1]} : vector<16x384xf32> to vector<16x32xf32>
    %102 = vector.shape_cast %101 : vector<16x32xf32> to vector<2x8x32xf32>
    %103 = arith.truncf %102 : vector<2x8x32xf32> to vector<2x8x32xbf16>
    %104 = vector.extract_strided_slice %34 {offsets = [0, 320], sizes = [16, 32], strides = [1, 1]} : vector<16x384xf32> to vector<16x32xf32>
    %105 = vector.shape_cast %104 : vector<16x32xf32> to vector<2x8x32xf32>
    %106 = arith.truncf %105 : vector<2x8x32xf32> to vector<2x8x32xbf16>
    "tpu.trace_start"() <{level = 10 : i32, message = "bqd,bkd->bqk"}> : () -> ()
    %cst_44 = arith.constant dense<0.000000e+00> : vector<2x8x8xf32>
    %107 = tpu.matmul %100, %103, %cst_44 {dimension_numbers = #tpu.dot_dimension_numbers<[2], [2], [1], [1], [0, 0, 0, 1, 1, 1], [0], [0]>} : vector<2x8x32xbf16>, vector<2x8x32xbf16>, vector<2x8x8xf32> -> vector<2x8x8xf32>
    "tpu.trace_stop"() : () -> ()
    %cst_45 = arith.constant dense<0xFF800000> : vector<2x8xf32>
    %108 = vector.multi_reduction <maximumf>, %107, %cst_45 [2] : vector<2x8x8xf32> to vector<2x8xf32>
    %109 = vector.shape_cast %108 : vector<2x8xf32> to vector<2x8x1xf32>
    %110 = vector.broadcast %109 : vector<2x8x1xf32> to vector<2x8x8xf32>
    %111 = arith.subf %107, %110 : vector<2x8x8xf32>
    %112 = math.exp %111 : vector<2x8x8xf32>
    %cst_46 = arith.constant dense<0.000000e+00> : vector<2x8xf32>
    %113 = vector.multi_reduction <add>, %112, %cst_46 [2] : vector<2x8x8xf32> to vector<2x8xf32>
    %114 = vector.shape_cast %113 : vector<2x8xf32> to vector<2x8x1xf32>
    %115 = tpu.reciprocal %114 {approx = true} : vector<2x8x1xf32> -> vector<2x8x1xf32>
    %116 = vector.broadcast %115 : vector<2x8x1xf32> to vector<2x8x8xf32>
    %117 = arith.mulf %112, %116 : vector<2x8x8xf32>
    %118 = arith.truncf %117 : vector<2x8x8xf32> to vector<2x8x8xbf16>
    "tpu.trace_start"() <{level = 10 : i32, message = "bqk,bkd->bqd"}> : () -> ()
    %cst_47 = arith.constant dense<0.000000e+00> : vector<2x8x32xf32>
    %119 = tpu.matmul %118, %106, %cst_47 {dimension_numbers = #tpu.dot_dimension_numbers<[2], [1], [1], [2], [0, 0, 0, 1, 1, 2], [0], [0]>} : vector<2x8x8xbf16>, vector<2x8x32xbf16>, vector<2x8x32xf32> -> vector<2x8x32xf32>
    "tpu.trace_stop"() : () -> ()
    %120 = vector.shape_cast %119 : vector<2x8x32xf32> to vector<16x32xf32>
    %121 = arith.truncf %120 : vector<16x32xf32> to vector<16x32xbf16>
    %122 = vector.extract_strided_slice %5 {offsets = [2, 0, 0], sizes = [1, 32, 128], strides = [1, 1, 1]} : vector<4x32x128xbf16> to vector<1x32x128xbf16>
    %123 = vector.shape_cast %122 : vector<1x32x128xbf16> to vector<32x128xbf16>
    %cst_48 = arith.constant dense<0.000000e+00> : vector<16x128xf32>
    %124 = tpu.matmul %121, %123, %cst_48 {dimension_numbers = #tpu.dot_dimension_numbers<[1], [0], [0], [1], [0, 0, 1, 1], [], []>} : vector<16x32xbf16>, vector<32x128xbf16>, vector<16x128xf32> -> vector<16x128xf32>
    %125 = arith.addf %95, %124 : vector<16x128xf32>
    %126 = vector.extract_strided_slice %34 {offsets = [0, 96], sizes = [16, 32], strides = [1, 1]} : vector<16x384xf32> to vector<16x32xf32>
    %cst_49 = arith.constant 0.176776692 : f32
    %127 = vector.broadcast %cst_49 : f32 to vector<16x32xf32>
    %128 = arith.mulf %126, %127 : vector<16x32xf32>
    %129 = vector.shape_cast %128 : vector<16x32xf32> to vector<2x8x32xf32>
    %130 = arith.truncf %129 : vector<2x8x32xf32> to vector<2x8x32xbf16>
    %131 = vector.extract_strided_slice %34 {offsets = [0, 224], sizes = [16, 32], strides = [1, 1]} : vector<16x384xf32> to vector<16x32xf32>
    %132 = vector.shape_cast %131 : vector<16x32xf32> to vector<2x8x32xf32>
    %133 = arith.truncf %132 : vector<2x8x32xf32> to vector<2x8x32xbf16>
    %134 = vector.extract_strided_slice %34 {offsets = [0, 352], sizes = [16, 32], strides = [1, 1]} : vector<16x384xf32> to vector<16x32xf32>
    %135 = vector.shape_cast %134 : vector<16x32xf32> to vector<2x8x32xf32>
    %136 = arith.truncf %135 : vector<2x8x32xf32> to vector<2x8x32xbf16>
    "tpu.trace_start"() <{level = 10 : i32, message = "bqd,bkd->bqk"}> : () -> ()
    %cst_50 = arith.constant dense<0.000000e+00> : vector<2x8x8xf32>
    %137 = tpu.matmul %130, %133, %cst_50 {dimension_numbers = #tpu.dot_dimension_numbers<[2], [2], [1], [1], [0, 0, 0, 1, 1, 1], [0], [0]>} : vector<2x8x32xbf16>, vector<2x8x32xbf16>, vector<2x8x8xf32> -> vector<2x8x8xf32>
    "tpu.trace_stop"() : () -> ()
    %cst_51 = arith.constant dense<0xFF800000> : vector<2x8xf32>
    %138 = vector.multi_reduction <maximumf>, %137, %cst_51 [2] : vector<2x8x8xf32> to vector<2x8xf32>
    %139 = vector.shape_cast %138 : vector<2x8xf32> to vector<2x8x1xf32>
    %140 = vector.broadcast %139 : vector<2x8x1xf32> to vector<2x8x8xf32>
    %141 = arith.subf %137, %140 : vector<2x8x8xf32>
    %142 = math.exp %141 : vector<2x8x8xf32>
    %cst_52 = arith.constant dense<0.000000e+00> : vector<2x8xf32>
    %143 = vector.multi_reduction <add>, %142, %cst_52 [2] : vector<2x8x8xf32> to vector<2x8xf32>
    %144 = vector.shape_cast %143 : vector<2x8xf32> to vector<2x8x1xf32>
    %145 = tpu.reciprocal %144 {approx = true} : vector<2x8x1xf32> -> vector<2x8x1xf32>
    %146 = vector.broadcast %145 : vector<2x8x1xf32> to vector<2x8x8xf32>
    %147 = arith.mulf %142, %146 : vector<2x8x8xf32>
    %148 = arith.truncf %147 : vector<2x8x8xf32> to vector<2x8x8xbf16>
    "tpu.trace_start"() <{level = 10 : i32, message = "bqk,bkd->bqd"}> : () -> ()
    %cst_53 = arith.constant dense<0.000000e+00> : vector<2x8x32xf32>
    %149 = tpu.matmul %148, %136, %cst_53 {dimension_numbers = #tpu.dot_dimension_numbers<[2], [1], [1], [2], [0, 0, 0, 1, 1, 2], [0], [0]>} : vector<2x8x8xbf16>, vector<2x8x32xbf16>, vector<2x8x32xf32> -> vector<2x8x32xf32>
    "tpu.trace_stop"() : () -> ()
    %150 = vector.shape_cast %149 : vector<2x8x32xf32> to vector<16x32xf32>
    %151 = arith.truncf %150 : vector<16x32xf32> to vector<16x32xbf16>
    %152 = vector.extract_strided_slice %5 {offsets = [3, 0, 0], sizes = [1, 32, 128], strides = [1, 1, 1]} : vector<4x32x128xbf16> to vector<1x32x128xbf16>
    %153 = vector.shape_cast %152 : vector<1x32x128xbf16> to vector<32x128xbf16>
    %cst_54 = arith.constant dense<0.000000e+00> : vector<16x128xf32>
    %154 = tpu.matmul %151, %153, %cst_54 {dimension_numbers = #tpu.dot_dimension_numbers<[1], [0], [0], [1], [0, 0, 1, 1], [], []>} : vector<16x32xbf16>, vector<32x128xbf16>, vector<16x128xf32> -> vector<16x128xf32>
    %155 = arith.addf %125, %154 : vector<16x128xf32>
    %156 = arith.addf %12, %155 : vector<16x128xf32>
    %157 = vector.broadcast %6 : vector<1x128xf32> to vector<16x128xf32>
    %158 = arith.addf %156, %157 : vector<16x128xf32>
    %cst_55 = arith.constant dense<0.000000e+00> : vector<16xf32>
    %159 = vector.multi_reduction <add>, %158, %cst_55 [1] : vector<16x128xf32> to vector<16xf32>
    %160 = vector.shape_cast %159 : vector<16xf32> to vector<16x1xf32>
    %cst_56 = arith.constant 1.280000e+02 : f32
    %161 = vector.broadcast %cst_56 : f32 to vector<16x1xf32>
    %162 = arith.divf %160, %161 : vector<16x1xf32>
    %163 = vector.broadcast %162 : vector<16x1xf32> to vector<16x128xf32>
    %164 = arith.subf %158, %163 : vector<16x128xf32>
    %165 = arith.mulf %164, %164 : vector<16x128xf32>
    %cst_57 = arith.constant dense<0.000000e+00> : vector<16xf32>
    %166 = vector.multi_reduction <add>, %165, %cst_57 [1] : vector<16x128xf32> to vector<16xf32>
    %167 = vector.shape_cast %166 : vector<16xf32> to vector<16x1xf32>
    %cst_58 = arith.constant 1.280000e+02 : f32
    %168 = vector.broadcast %cst_58 : f32 to vector<16x1xf32>
    %169 = arith.divf %167, %168 : vector<16x1xf32>
    %cst_59 = arith.constant 9.99999974E-6 : f32
    %170 = vector.broadcast %cst_59 : f32 to vector<16x1xf32>
    %171 = arith.addf %169, %170 : vector<16x1xf32>
    %172 = math.rsqrt %171 : vector<16x1xf32>
    %173 = vector.broadcast %172 : vector<16x1xf32> to vector<16x128xf32>
    %174 = arith.mulf %164, %173 : vector<16x128xf32>
    %175 = vector.broadcast %2 : vector<1x128xf32> to vector<16x128xf32>
    %176 = arith.mulf %174, %175 : vector<16x128xf32>
    %177 = vector.broadcast %3 : vector<1x128xf32> to vector<16x128xf32>
    %178 = arith.addf %176, %177 : vector<16x128xf32>
    %179 = arith.truncf %178 : vector<16x128xf32> to vector<16x128xbf16>
    %cst_60 = arith.constant dense<0.000000e+00> : vector<16x512xf32>
    %180 = tpu.matmul %179, %7, %cst_60 {dimension_numbers = #tpu.dot_dimension_numbers<[1], [0], [0], [1], [0, 0, 1, 1], [], []>} : vector<16x128xbf16>, vector<128x512xbf16>, vector<16x512xf32> -> vector<16x512xf32>
    %181 = vector.broadcast %8 : vector<1x512xf32> to vector<16x512xf32>
    %182 = arith.addf %180, %181 : vector<16x512xf32>
    %cst_61 = arith.constant 5.000000e-01 : f32
    %183 = vector.broadcast %cst_61 : f32 to vector<16x512xf32>
    %184 = arith.mulf %183, %182 : vector<16x512xf32>
    %cst_62 = arith.constant 0.707106769 : f32
    %185 = vector.broadcast %cst_62 : f32 to vector<16x512xf32>
    %186 = arith.mulf %182, %185 : vector<16x512xf32>
    %187 = math.erf %186 : vector<16x512xf32>
    %cst_63 = arith.constant 1.000000e+00 : f32
    %188 = vector.broadcast %cst_63 : f32 to vector<16x512xf32>
    %189 = arith.addf %188, %187 : vector<16x512xf32>
    %190 = arith.mulf %184, %189 : vector<16x512xf32>
    %191 = arith.truncf %190 : vector<16x512xf32> to vector<16x512xbf16>
    %cst_64 = arith.constant dense<0.000000e+00> : vector<16x128xf32>
    %192 = tpu.matmul %191, %9, %cst_64 {dimension_numbers = #tpu.dot_dimension_numbers<[1], [0], [0], [1], [0, 0, 1, 1], [], []>} : vector<16x512xbf16>, vector<512x128xbf16>, vector<16x128xf32> -> vector<16x128xf32>
    %193 = vector.broadcast %10 : vector<1x128xf32> to vector<16x128xf32>
    %194 = arith.addf %192, %193 : vector<16x128xf32>
    %195 = arith.addf %158, %194 : vector<16x128xf32>
    %196 = vector.shape_cast %195 : vector<16x128xf32> to vector<2x8x128xf32>
    %c0_65 = arith.constant 0 : index
    %c0_66 = arith.constant 0 : index
    %c0_67 = arith.constant 0 : index
    %197 = vector.load %arg13[%c0_65, %c0_66, %c0_67] : memref<2x8x128xf32, #tpu.memory_space<vmem>>, vector<2x8x128xf32>
    tpu.vector_store %arg13[%c0_65, %c0_66, %c0_67], %196 {strides = array<i32>} : memref<2x8x128xf32, #tpu.memory_space<vmem>>, vector<2x8x128xf32>,
    return
  }
  func.func @transform_0(%arg0: i32) -> (i32, i32, i32) {
    %c0_i32 = arith.constant 0 : i32
    %c0_i32_0 = arith.constant 0 : i32
    %c0_i32_1 = arith.constant 0 : i32
    return %arg0, %c0_i32, %c0_i32_0 : i32, i32, i32
  }
  func.func @transform_1(%arg0: i32) -> (i32, i32) {
    %c0_i32 = arith.constant 0 : i32
    %c0_i32_0 = arith.constant 0 : i32
    %c0_i32_1 = arith.constant 0 : i32
    return %c0_i32, %c0_i32_0 : i32, i32
  }
  func.func @transform_2(%arg0: i32) -> (i32, i32) {
    %c0_i32 = arith.constant 0 : i32
    %c0_i32_0 = arith.constant 0 : i32
    %c0_i32_1 = arith.constant 0 : i32
    return %c0_i32, %c0_i32_0 : i32, i32
  }
  func.func @transform_3(%arg0: i32) -> (i32, i32) {
    %c0_i32 = arith.constant 0 : i32
    %c0_i32_0 = arith.constant 0 : i32
    %c0_i32_1 = arith.constant 0 : i32
    return %c0_i32, %c0_i32_0 : i32, i32
  }
  func.func @transform_4(%arg0: i32) -> (i32, i32, i32) {
    %c0_i32 = arith.constant 0 : i32
    %c0_i32_0 = arith.constant 0 : i32
    %c0_i32_1 = arith.constant 0 : i32
    %c0_i32_2 = arith.constant 0 : i32
    return %c0_i32, %c0_i32_0, %c0_i32_1 : i32, i32, i32
  }
  func.func @transform_5(%arg0: i32) -> (i32, i32) {
    %c0_i32 = arith.constant 0 : i32
    %c0_i32_0 = arith.constant 0 : i32
    %c0_i32_1 = arith.constant 0 : i32
    return %c0_i32, %c0_i32_0 : i32, i32
  }
  func.func @transform_6(%arg0: i32) -> (i32, i32) {
    %c0_i32 = arith.constant 0 : i32
    %c0_i32_0 = arith.constant 0 : i32
    %c0_i32_1 = arith.constant 0 : i32
    return %c0_i32, %c0_i32_0 : i32, i32
  }
  func.func @transform_7(%arg0: i32) -> (i32, i32) {
    %c0_i32 = arith.constant 0 : i32
    %c0_i32_0 = arith.constant 0 : i32
    %c0_i32_1 = arith.constant 0 : i32
    return %c0_i32, %c0_i32_0 : i32, i32
  }
  func.func @transform_8(%arg0: i32) -> (i32, i32) {
    %c0_i32 = arith.constant 0 : i32
    %c0_i32_0 = arith.constant 0 : i32
    %c0_i32_1 = arith.constant 0 : i32
    return %c0_i32, %c0_i32_0 : i32, i32
  }
  func.func @transform_9(%arg0: i32) -> (i32, i32) {
    %c0_i32 = arith.constant 0 : i32
    %c0_i32_0 = arith.constant 0 : i32
    %c0_i32_1 = arith.constant 0 : i32
    return %c0_i32, %c0_i32_0 : i32, i32
  }
  func.func @transform_10(%arg0: i32) -> (i32, i32) {
    %c0_i32 = arith.constant 0 : i32
    %c0_i32_0 = arith.constant 0 : i32
    %c0_i32_1 = arith.constant 0 : i32
    return %c0_i32, %c0_i32_0 : i32, i32
  }
  func.func @transform_11(%arg0: i32) -> (i32, i32) {
    %c0_i32 = arith.constant 0 : i32
    %c0_i32_0 = arith.constant 0 : i32
    %c0_i32_1 = arith.constant 0 : i32
    return %c0_i32, %c0_i32_0 : i32, i32
  }
  func.func @transform_12(%arg0: i32) -> (i32, i32, i32) {
    %c0_i32 = arith.constant 0 : i32
    %c0_i32_0 = arith.constant 0 : i32
    %c0_i32_1 = arith.constant 0 : i32
    return %arg0, %c0_i32, %c0_i32_0 : i32, i32, i32
  }
}

</mosaic_0001>

<llo_original>
// kernel: tpu_custom_call.1
$region0: #{tpu_custom_call.1}
  #allocation0 [shape = 'u32[]', space=smem, size = 0x4, offset = 0x4, fixed_abs, tag = 'smem constant byte address 0x4 - core index']
  #allocation1 [shape = 'u32[72,128]{1,0:T(1,128)}', space=vmem, size = 0x9000, scoped, tag = 'internal scratch']
  %s0 = inlined_call_operand.hbm [shape: f32[2,8,128], index: 0, kind: input, shape index: {}]
  %s1 = inlined_call_operand.hbm [shape: f32[1,128], index: 1, kind: input, shape index: {}]
  %s2 = inlined_call_operand.vmem [shape: f32[1,128], index: 2, kind: input, shape index: {}]
  %s3 = inlined_call_operand.hbm [shape: bf16[128,384], index: 3, kind: input, shape index: {}]
  %s4 = inlined_call_operand.hbm [shape: bf16[4,32,128], index: 4, kind: input, shape index: {}]
  %s5 = inlined_call_operand.vmem [shape: f32[1,128], index: 5, kind: input, shape index: {}]
  %s6 = inlined_call_operand.vmem [shape: f32[1,128], index: 6, kind: input, shape index: {}]
  %s7 = inlined_call_operand.hbm [shape: f32[1,128], index: 7, kind: input, shape index: {}]
  %s8 = inlined_call_operand.hbm [shape: bf16[128,512], index: 8, kind: input, shape index: {}]
  %s9 = inlined_call_operand.vmem [shape: f32[1,512], index: 9, kind: input, shape index: {}]
  %s10 = inlined_call_operand.hbm [shape: bf16[512,128], index: 10, kind: input, shape index: {}]
  %s11 = inlined_call_operand.vmem [shape: f32[1,128], index: 11, kind: input, shape index: {}]
  %s12 = inlined_call_operand.hbm [shape: f32[2,8,128], index: 12, kind: output, shape index: {}]
  %s13 = sld [smem:[#allocation0]]
  $region86: #{tpu_custom_call.1} parent=0
    _
  %s15 = ssub.s32 1, %s13
  %s16 = scalar_select 0, %s15, %s13
  $region1: #{tpu_custom_call.1} parent=0
    #allocation2 [shape = 'u8[8192]{0}', space=vmem, size = 0x2000, scoped, tag = 'input window, operand 0, single buffered']
    #allocation3 [shape = 's32[1]{0}', space=sflag, size = 0x4, scoped, tag = 'scoped memory for tpu_custom_call.1']
    #allocation4 [shape = 's32[1]{0}', space=sflag, size = 0x4, scoped, tag = 'scoped memory for tpu_custom_call.1']
    #allocation5 [shape = 'u8[512]{0}', space=vmem, size = 0x400, scoped, tag = 'input window, operand 1, single buffered']
    #allocation6 [shape = 's32[1]{0}', space=sflag, size = 0x4, scoped, tag = 'scoped memory for tpu_custom_call.1']
    #allocation7 [shape = 'u8[98304]{0}', space=vmem, size = 0x18000, scoped, tag = 'input window, operand 3, single buffered']
    #allocation8 [shape = 'u8[32768]{0}', space=vmem, size = 0x8000, scoped, tag = 'input window, operand 4, single buffered']
    #allocation9 [shape = 's32[1]{0}', space=sflag, size = 0x4, scoped, tag = 'scoped memory for tpu_custom_call.1']
    #allocation10 [shape = 'u8[512]{0}', space=vmem, size = 0x400, scoped, tag = 'input window, operand 7, single buffered']
    #allocation11 [shape = 'u8[131072]{0}', space=vmem, size = 0x20000, scoped, tag = 'input window, operand 8, single buffered']
    #allocation12 [shape = 's32[1]{0}', space=sflag, size = 0x4, scoped, tag = 'scoped memory for tpu_custom_call.1']
    #allocation13 [shape = 'u8[131072]{0}', space=vmem, size = 0x20000, scoped, tag = 'input window, operand 10, single buffered']
    #allocation14 [shape = 'u8[8192]{0}', space=vmem, size = 0x2000, scoped, tag = 'output window, operand 0, single buffered']
    %17 = vsyncpa [#allocation3], 0
    %18 = vsyncpa [#allocation6], 0
    %19 = vsyncpa [#allocation9], 0
    %20 = vsyncpa [#allocation12], 0
    %21 = vsyncpa [#allocation4], 0
    // Predicated region
    $region2: #{tpu_custom_call.1} parent=1 // pred_check
      _
    $region3: #{tpu_custom_call.1} parent=1 // pred_check_branch
      %23 = sbr.rel (0) target = $region5
    $region4: #{tpu_custom_call.1} parent=1 // pred_region
      %25 = vsyncadd [#allocation3], 0
      %s26 = sshll.u32 %s0, 4
      %s27 = int_to_ptr.hbm [resolvable:$true] %s26
      %s28 = sshll.u32 [#allocation2], 4
      %s29 = int_to_ptr.vmem [resolvable:$true] %s28
      %34 = dma.hbm_to_vmem [thread:$0]  %s27, 256, %s29, [#allocation3], 128, 128, 8
    $region5: #{tpu_custom_call.1} parent=1 // pred_fallthru
      _
    // Predicated region
    $region6: #{tpu_custom_call.1} parent=1 // pred_check
      _
    $region7: #{tpu_custom_call.1} parent=1 // pred_check_branch
      %36 = sbr.rel (0) target = $region9
    $region8: #{tpu_custom_call.1} parent=1 // pred_region
      %38 = vsyncadd [#allocation6], 0
      %s40 = sshll.u32 %s1, 4
      %s41 = int_to_ptr.hbm [resolvable:$true] %s40
      %s42 = sshll.u32 [#allocation5], 4
      %s43 = int_to_ptr.vmem [resolvable:$true] %s42
      %45 = dma.hbm_to_vmem [thread:$0]  %s41, 16, %s43, [#allocation6]
    $region9: #{tpu_custom_call.1} parent=1 // pred_fallthru
      _
    // Predicated region
    $region10: #{tpu_custom_call.1} parent=1 // pred_check
      _
    $region11: #{tpu_custom_call.1} parent=1 // pred_check_branch
      %47 = sbr.rel (0) target = $region13
    $region12: #{tpu_custom_call.1} parent=1 // pred_region
      _
    $region13: #{tpu_custom_call.1} parent=1 // pred_fallthru
      _
    // Predicated region
    $region14: #{tpu_custom_call.1} parent=1 // pred_check
      _
    $region15: #{tpu_custom_call.1} parent=1 // pred_check_branch
      %49 = sbr.rel (0) target = $region17
    $region16: #{tpu_custom_call.1} parent=1 // pred_region
      %51 = vsyncadd [#allocation6], 0
      %s52 = sshll.u32 %s3, 4
      %s53 = int_to_ptr.hbm [resolvable:$true] %s52
      %s54 = sshll.u32 [#allocation7], 4
      %s55 = int_to_ptr.vmem [resolvable:$true] %s54
      %60 = dma.hbm_to_vmem [thread:$0]  %s53, 3072, %s55, [#allocation6], 192, 192, 12
    $region17: #{tpu_custom_call.1} parent=1 // pred_fallthru
      _
    // Predicated region
    $region18: #{tpu_custom_call.1} parent=1 // pred_check
      _
    $region19: #{tpu_custom_call.1} parent=1 // pred_check_branch
      %62 = sbr.rel (0) target = $region21
    $region20: #{tpu_custom_call.1} parent=1 // pred_region
      %64 = vsyncadd [#allocation9], 0
      %s65 = sshll.u32 %s4, 4
      %s66 = int_to_ptr.hbm [resolvable:$true] %s65
      %s67 = sshll.u32 [#allocation8], 4
      %s68 = int_to_ptr.vmem [resolvable:$true] %s67
      %73 = dma.hbm_to_vmem [thread:$0]  %s66, 1024, %s68, [#allocation9], 64, 64, 4
    $region21: #{tpu_custom_call.1} parent=1 // pred_fallthru
      _
    // Predicated region
    $region22: #{tpu_custom_call.1} parent=1 // pred_check
      _
    $region23: #{tpu_custom_call.1} parent=1 // pred_check_branch
      %75 = sbr.rel (0) target = $region25
    $region24: #{tpu_custom_call.1} parent=1 // pred_region
      _
    $region25: #{tpu_custom_call.1} parent=1 // pred_fallthru
      _
    // Predicated region
    $region26: #{tpu_custom_call.1} parent=1 // pred_check
      _
    $region27: #{tpu_custom_call.1} parent=1 // pred_check_branch
      %77 = sbr.rel (0) target = $region29
    $region28: #{tpu_custom_call.1} parent=1 // pred_region
      _
    $region29: #{tpu_custom_call.1} parent=1 // pred_fallthru
      _
    // Predicated region
    $region30: #{tpu_custom_call.1} parent=1 // pred_check
      _
    $region31: #{tpu_custom_call.1} parent=1 // pred_check_branch
      %79 = sbr.rel (0) target = $region33
    $region32: #{tpu_custom_call.1} parent=1 // pred_region
      %81 = vsyncadd [#allocation9], 0
      %s83 = sshll.u32 %s7, 4
      %s84 = int_to_ptr.hbm [resolvable:$true] %s83
      %s85 = sshll.u32 [#allocation10], 4
      %s86 = int_to_ptr.vmem [resolvable:$true] %s85
      %88 = dma.hbm_to_vmem [thread:$0]  %s84, 16, %s86, [#allocation9]
    $region33: #{tpu_custom_call.1} parent=1 // pred_fallthru
      _
    // Predicated region
    $region34: #{tpu_custom_call.1} parent=1 // pred_check
      _
    $region35: #{tpu_custom_call.1} parent=1 // pred_check_branch
      %90 = sbr.rel (0) target = $region37
    $region36: #{tpu_custom_call.1} parent=1 // pred_region
      %92 = vsyncadd [#allocation12], 0
      %s93 = sshll.u32 %s8, 4
      %s94 = int_to_ptr.hbm [resolvable:$true] %s93
      %s95 = sshll.u32 [#allocation11], 4
      %s96 = int_to_ptr.vmem [resolvable:$true] %s95
      %101 = dma.hbm_to_vmem [thread:$0]  %s94, 4096, %s96, [#allocation12], 256, 256, 16
    $region37: #{tpu_custom_call.1} parent=1 // pred_fallthru
      _
    // Predicated region
    $region38: #{tpu_custom_call.1} parent=1 // pred_check
      _
    $region39: #{tpu_custom_call.1} parent=1 // pred_check_branch
      %103 = sbr.rel (0) target = $region41
    $region40: #{tpu_custom_call.1} parent=1 // pred_region
      _
    $region41: #{tpu_custom_call.1} parent=1 // pred_fallthru
      _
    // Predicated region
    $region42: #{tpu_custom_call.1} parent=1 // pred_check
      _
    $region43: #{tpu_custom_call.1} parent=1 // pred_check_branch
      %105 = sbr.rel (0) target = $region45
    $region44: #{tpu_custom_call.1} parent=1 // pred_region
      %107 = vsyncadd [#allocation12], 0
      %s108 = sshll.u32 %s10, 4
      %s109 = int_to_ptr.hbm [resolvable:$true] %s108
      %s110 = sshll.u32 [#allocation13], 4
      %s111 = int_to_ptr.vmem [resolvable:$true] %s110
      %116 = dma.hbm_to_vmem [thread:$0]  %s109, 4096, %s111, [#allocation12], 64, 64, 4
    $region45: #{tpu_custom_call.1} parent=1 // pred_fallthru
      _
    // Predicated region
    $region46: #{tpu_custom_call.1} parent=1 // pred_check
      _
    $region47: #{tpu_custom_call.1} parent=1 // pred_check_branch
      %118 = sbr.rel (0) target = $region49
    $region48: #{tpu_custom_call.1} parent=1 // pred_region
      _
    $region49: #{tpu_custom_call.1} parent=1 // pred_fallthru
      _
    // Predicated region
    $region50: #{tpu_custom_call.1} parent=1 // pred_check
      _
    $region51: #{tpu_custom_call.1} parent=1 // pred_check_branch
      %120 = sbr.rel (0) target = $region53
    $region52: #{tpu_custom_call.1} parent=1 // pred_region
      %122 = dma.done [#allocation3], 256
    $region53: #{tpu_custom_call.1} parent=1 // pred_fallthru
      _
    // Predicated region
    $region54: #{tpu_custom_call.1} parent=1 // pred_check
      _
    $region55: #{tpu_custom_call.1} parent=1 // pred_check_branch
      %124 = sbr.rel (0) target = $region57
    $region56: #{tpu_custom_call.1} parent=1 // pred_region
      %126 = dma.done [#allocation6], 16
    $region57: #{tpu_custom_call.1} parent=1 // pred_fallthru
      _
    // Predicated region
    $region58: #{tpu_custom_call.1} parent=1 // pred_check
      _
    $region59: #{tpu_custom_call.1} parent=1 // pred_check_branch
      %128 = sbr.rel (0) target = $region61
    $region60: #{tpu_custom_call.1} parent=1 // pred_region
      %130 = dma.done [#allocation6], 3072
    $region61: #{tpu_custom_call.1} parent=1 // pred_fallthru
      _
    // Predicated region
    $region62: #{tpu_custom_call.1} parent=1 // pred_check
      _
    $region63: #{tpu_custom_call.1} parent=1 // pred_check_branch
      %132 = sbr.rel (0) target = $region65
    $region64: #{tpu_custom_call.1} parent=1 // pred_region
      %134 = dma.done [#allocation9], 1024
    $region65: #{tpu_custom_call.1} parent=1 // pred_fallthru
      _
    // Predicated region
    $region66: #{tpu_custom_call.1} parent=1 // pred_check
      _
    $region67: #{tpu_custom_call.1} parent=1 // pred_check_branch
      %136 = sbr.rel (0) target = $region69
    $region68: #{tpu_custom_call.1} parent=1 // pred_region
      %138 = dma.done [#allocation9], 16
    $region69: #{tpu_custom_call.1} parent=1 // pred_fallthru
      _
    // Predicated region
    $region70: #{tpu_custom_call.1} parent=1 // pred_check
      _
    $region71: #{tpu_custom_call.1} parent=1 // pred_check_branch
      %140 = sbr.rel (0) target = $region73
    $region72: #{tpu_custom_call.1} parent=1 // pred_region
      %142 = dma.done [#allocation12], 4096
    $region73: #{tpu_custom_call.1} parent=1 // pred_fallthru
      _
    // Predicated region
    $region74: #{tpu_custom_call.1} parent=1 // pred_check
      _
    $region75: #{tpu_custom_call.1} parent=1 // pred_check_branch
      %144 = sbr.rel (0) target = $region77
    $region76: #{tpu_custom_call.1} parent=1 // pred_region
      %146 = dma.done [#allocation12], 4096
    $region77: #{tpu_custom_call.1} parent=1 // pred_fallthru
      _
    %v148 = vld [vmem:[#allocation5] sm:$0x1]
    %v149 = vld [vmem:[%s2] sm:$0x1]
    %v150 = vld [vmem:[%s6] sm:$0x1]
    %v151 = vld [vmem:[#allocation10] sm:$0x1]
    %v152 = vld [vmem:[#allocation7] sm:$0xff]
    %v153 = vld [vmem:[#allocation7 + $0x8] sm:$0xf]
    %v154 = vld [vmem:[#allocation7 + $0xc] sm:$0xff]
    %v155 = vld [vmem:[#allocation7 + $0x14] sm:$0xf]
    %v156 = vld [vmem:[#allocation7 + $0x18] sm:$0xff]
    %v157 = vld [vmem:[#allocation7 + $0x20] sm:$0xf]
    %v158 = vld [vmem:[#allocation7 + $0x24] sm:$0xff]
    %v159 = vld [vmem:[#allocation7 + $0x2c] sm:$0xf]
    %v160 = vld [vmem:[#allocation7 + $0x30] sm:$0xff]
    %v161 = vld [vmem:[#allocation7 + $0x38] sm:$0xf]
    %v162 = vld [vmem:[#allocation7 + $0x3c] sm:$0xff]
    %v163 = vld [vmem:[#allocation7 + $0x44] sm:$0xf]
    %v164 = vld [vmem:[#allocation7 + $0x48] sm:$0xff]
    %v165 = vld [vmem:[#allocation7 + $0x50] sm:$0xf]
    %v166 = vld [vmem:[#allocation7 + $0x54] sm:$0xff]
    %v167 = vld [vmem:[#allocation7 + $0x5c] sm:$0xf]
    %v168 = vld [vmem:[#allocation7 + $0x60] sm:$0xff]
    %v169 = vld [vmem:[#allocation7 + $0x68] sm:$0xf]
    %v170 = vld [vmem:[#allocation7 + $0x6c] sm:$0xff]
    %v171 = vld [vmem:[#allocation7 + $0x74] sm:$0xf]
    %v172 = vld [vmem:[#allocation7 + $0x78] sm:$0xff]
    %v173 = vld [vmem:[#allocation7 + $0x80] sm:$0xf]
    %v174 = vld [vmem:[#allocation7 + $0x84] sm:$0xff]
    %v175 = vld [vmem:[#allocation7 + $0x8c] sm:$0xf]
    %v176 = vld [vmem:[#allocation7 + $0x90] sm:$0xff]
    %v177 = vld [vmem:[#allocation7 + $0x98] sm:$0xf]
    %v178 = vld [vmem:[#allocation7 + $0x9c] sm:$0xff]
    %v179 = vld [vmem:[#allocation7 + $0xa4] sm:$0xf]
    %v180 = vld [vmem:[#allocation7 + $0xa8] sm:$0xff]
    %v181 = vld [vmem:[#allocation7 + $0xb0] sm:$0xf]
    %v182 = vld [vmem:[#allocation7 + $0xb4] sm:$0xff]
    %v183 = vld [vmem:[#allocation7 + $0xbc] sm:$0xf]
    %v184 = vld [vmem:[#allocation8] sm:$0xf]
    %v185 = vld [vmem:[#allocation8 + $0x4] sm:$0xf]
    %v186 = vld [vmem:[#allocation8 + $0x8] sm:$0xf]
    %v187 = vld [vmem:[#allocation8 + $0xc] sm:$0xf]
    %v188 = vld [vmem:[#allocation8 + $0x10] sm:$0xf]
    %v189 = vld [vmem:[#allocation8 + $0x14] sm:$0xf]
    %v190 = vld [vmem:[#allocation8 + $0x18] sm:$0xf]
    %v191 = vld [vmem:[#allocation8 + $0x1c] sm:$0xf]
    %v192 = vld [vmem:[#allocation8 + $0x20] sm:$0xf]
    %v193 = vld [vmem:[#allocation8 + $0x24] sm:$0xf]
    %v194 = vld [vmem:[#allocation8 + $0x28] sm:$0xf]
    %v195 = vld [vmem:[#allocation8 + $0x2c] sm:$0xf]
    %v196 = vld [vmem:[#allocation8 + $0x30] sm:$0xf]
    %v197 = vld [vmem:[#allocation8 + $0x34] sm:$0xf]
    %v198 = vld [vmem:[#allocation8 + $0x38] sm:$0xf]
    %v199 = vld [vmem:[#allocation8 + $0x3c] sm:$0xf]
    %v200 = vld [vmem:[%s5] sm:$0x1]
    %v201 = vld [vmem:[#allocation11] sm:$0xff]
    %v202 = vld [vmem:[#allocation11 + $0x8] sm:$0xff]
    %v203 = vld [vmem:[#allocation11 + $0x10] sm:$0xff]
    %v204 = vld [vmem:[#allocation11 + $0x18] sm:$0xff]
    %v205 = vld [vmem:[#allocation11 + $0x20] sm:$0xff]
    %v206 = vld [vmem:[#allocation11 + $0x28] sm:$0xff]
    %v207 = vld [vmem:[#allocation11 + $0x30] sm:$0xff]
    %v208 = vld [vmem:[#allocation11 + $0x38] sm:$0xff]
    %v209 = vld [vmem:[#allocation11 + $0x40] sm:$0xff]
    %v210 = vld [vmem:[#allocation11 + $0x48] sm:$0xff]
    %v211 = vld [vmem:[#allocation11 + $0x50] sm:$0xff]
    %v212 = vld [vmem:[#allocation11 + $0x58] sm:$0xff]
    %v213 = vld [vmem:[#allocation11 + $0x60] sm:$0xff]
    %v214 = vld [vmem:[#allocation11 + $0x68] sm:$0xff]
    %v215 = vld [vmem:[#allocation11 + $0x70] sm:$0xff]
    %v216 = vld [vmem:[#allocation11 + $0x78] sm:$0xff]
    %v217 = vld [vmem:[#allocation11 + $0x80] sm:$0xff]
    %v218 = vld [vmem:[#allocation11 + $0x88] sm:$0xff]
    %v219 = vld [vmem:[#allocation11 + $0x90] sm:$0xff]
    %v220 = vld [vmem:[#allocation11 + $0x98] sm:$0xff]
    %v221 = vld [vmem:[#allocation11 + $0xa0] sm:$0xff]
    %v222 = vld [vmem:[#allocation11 + $0xa8] sm:$0xff]
    %v223 = vld [vmem:[#allocation11 + $0xb0] sm:$0xff]
    %v224 = vld [vmem:[#allocation11 + $0xb8] sm:$0xff]
    %v225 = vld [vmem:[#allocation11 + $0xc0] sm:$0xff]
    %v226 = vld [vmem:[#allocation11 + $0xc8] sm:$0xff]
    %v227 = vld [vmem:[#allocation11 + $0xd0] sm:$0xff]
    %v228 = vld [vmem:[#allocation11 + $0xd8] sm:$0xff]
    %v229 = vld [vmem:[#allocation11 + $0xe0] sm:$0xff]
    %v230 = vld [vmem:[#allocation11 + $0xe8] sm:$0xff]
    %v231 = vld [vmem:[#allocation11 + $0xf0] sm:$0xff]
    %v232 = vld [vmem:[#allocation11 + $0xf8] sm:$0xff]
    %v233 = vld [vmem:[%s9] sm:$0xf]
    %v234 = vld [vmem:[#allocation13] sm:$0xf]
    %v235 = vld [vmem:[#allocation13 + $0x4] sm:$0xf]
    %v236 = vld [vmem:[#allocation13 + $0x8] sm:$0xf]
    %v237 = vld [vmem:[#allocation13 + $0xc] sm:$0xf]
    %v238 = vld [vmem:[#allocation13 + $0x10] sm:$0xf]
    %v239 = vld [vmem:[#allocation13 + $0x14] sm:$0xf]
    %v240 = vld [vmem:[#allocation13 + $0x18] sm:$0xf]
    %v241 = vld [vmem:[#allocation13 + $0x1c] sm:$0xf]
    %v242 = vld [vmem:[#allocation13 + $0x20] sm:$0xf]
    %v243 = vld [vmem:[#allocation13 + $0x24] sm:$0xf]
    %v244 = vld [vmem:[#allocation13 + $0x28] sm:$0xf]
    %v245 = vld [vmem:[#allocation13 + $0x2c] sm:$0xf]
    %v246 = vld [vmem:[#allocation13 + $0x30] sm:$0xf]
    %v247 = vld [vmem:[#allocation13 + $0x34] sm:$0xf]
    %v248 = vld [vmem:[#allocation13 + $0x38] sm:$0xf]
    %v249 = vld [vmem:[#allocation13 + $0x3c] sm:$0xf]
    %v250 = vld [vmem:[#allocation13 + $0x40] sm:$0xf]
    %v251 = vld [vmem:[#allocation13 + $0x44] sm:$0xf]
    %v252 = vld [vmem:[#allocation13 + $0x48] sm:$0xf]
    %v253 = vld [vmem:[#allocation13 + $0x4c] sm:$0xf]
    %v254 = vld [vmem:[#allocation13 + $0x50] sm:$0xf]
    %v255 = vld [vmem:[#allocation13 + $0x54] sm:$0xf]
    %v256 = vld [vmem:[#allocation13 + $0x58] sm:$0xf]
    %v257 = vld [vmem:[#allocation13 + $0x5c] sm:$0xf]
    %v258 = vld [vmem:[#allocation13 + $0x60] sm:$0xf]
    %v259 = vld [vmem:[#allocation13 + $0x64] sm:$0xf]
    %v260 = vld [vmem:[#allocation13 + $0x68] sm:$0xf]
    %v261 = vld [vmem:[#allocation13 + $0x6c] sm:$0xf]
    %v262 = vld [vmem:[#allocation13 + $0x70] sm:$0xf]
    %v263 = vld [vmem:[#allocation13 + $0x74] sm:$0xf]
    %v264 = vld [vmem:[#allocation13 + $0x78] sm:$0xf]
    %v265 = vld [vmem:[#allocation13 + $0x7c] sm:$0xf]
    %v266 = vld [vmem:[#allocation13 + $0x80] sm:$0xf]
    %v267 = vld [vmem:[#allocation13 + $0x84] sm:$0xf]
    %v268 = vld [vmem:[#allocation13 + $0x88] sm:$0xf]
    %v269 = vld [vmem:[#allocation13 + $0x8c] sm:$0xf]
    %v270 = vld [vmem:[#allocation13 + $0x90] sm:$0xf]
    %v271 = vld [vmem:[#allocation13 + $0x94] sm:$0xf]
    %v272 = vld [vmem:[#allocation13 + $0x98] sm:$0xf]
    %v273 = vld [vmem:[#allocation13 + $0x9c] sm:$0xf]
    %v274 = vld [vmem:[#allocation13 + $0xa0] sm:$0xf]
    %v275 = vld [vmem:[#allocation13 + $0xa4] sm:$0xf]
    %v276 = vld [vmem:[#allocation13 + $0xa8] sm:$0xf]
    %v277 = vld [vmem:[#allocation13 + $0xac] sm:$0xf]
    %v278 = vld [vmem:[#allocation13 + $0xb0] sm:$0xf]
    %v279 = vld [vmem:[#allocation13 + $0xb4] sm:$0xf]
    %v280 = vld [vmem:[#allocation13 + $0xb8] sm:$0xf]
    %v281 = vld [vmem:[#allocation13 + $0xbc] sm:$0xf]
    %v282 = vld [vmem:[#allocation13 + $0xc0] sm:$0xf]
    %v283 = vld [vmem:[#allocation13 + $0xc4] sm:$0xf]
    %v284 = vld [vmem:[#allocation13 + $0xc8] sm:$0xf]
    %v285 = vld [vmem:[#allocation13 + $0xcc] sm:$0xf]
    %v286 = vld [vmem:[#allocation13 + $0xd0] sm:$0xf]
    %v287 = vld [vmem:[#allocation13 + $0xd4] sm:$0xf]
    %v288 = vld [vmem:[#allocation13 + $0xd8] sm:$0xf]
    %v289 = vld [vmem:[#allocation13 + $0xdc] sm:$0xf]
    %v290 = vld [vmem:[#allocation13 + $0xe0] sm:$0xf]
    %v291 = vld [vmem:[#allocation13 + $0xe4] sm:$0xf]
    %v292 = vld [vmem:[#allocation13 + $0xe8] sm:$0xf]
    %v293 = vld [vmem:[#allocation13 + $0xec] sm:$0xf]
    %v294 = vld [vmem:[#allocation13 + $0xf0] sm:$0xf]
    %v295 = vld [vmem:[#allocation13 + $0xf4] sm:$0xf]
    %v296 = vld [vmem:[#allocation13 + $0xf8] sm:$0xf]
    %v297 = vld [vmem:[#allocation13 + $0xfc] sm:$0xf]
    %v298 = vld [vmem:[%s11] sm:$0x1]
    %v299 = vld [vmem:[#allocation2] sm:$0xff]
    %v300 = vld [vmem:[#allocation2 + $0x8] sm:$0xff]
    %301 = vadd.xlane.f32.xlu0 %v299
    %v302 = vpop.xlane.xlu0 %301
    %303 = vadd.xlane.f32.xlu0 %v300
    %v304 = vpop.xlane.xlu0 %303
    %v305 = vrcp.pop 128.0
    %v306 = vmul.f32 128.0, %v305
    %v307 = vsub.f32 1.0, %v306
    %v308 = vmul.f32 %v305, %v307
    %v309 = vadd.f32 %v305, %v308
    %vm310 = vweird.f32 %v305
    %v311 = vsel %vm310, %v305, %v309
    %v312 = vmul.f32 %v302, %v311
    %v313 = vmul.f32 %v304, %v311
    %v314 = vsub.f32 %v299, %v312
    %v315 = vsub.f32 %v300, %v313
    %v316 = vmul.f32 %v314, %v314
    %v317 = vmul.f32 %v315, %v315
    %318 = vadd.xlane.f32.xlu0 %v316
    %v319 = vpop.xlane.xlu0 %318
    %320 = vadd.xlane.f32.xlu0 %v317
    %v321 = vpop.xlane.xlu0 %320
    %v322 = vmul.f32 %v319, %v311
    %v323 = vmul.f32 %v321, %v311
    %v324 = vadd.f32 %v322, 1e-05
    %v325 = vadd.f32 %v323, 1e-05
    %v326 = vrsqrt.pop %v324
    %v327 = vmul.f32 %v326, %v324
    %v328 = vmul.f32 %v327, %v326
    %v329 = vmul.f32 0.5, %v328
    %v330 = vsub.f32 1.5, %v329
    %v331 = vmul.f32 %v326, %v330
    %vm332 = vweird.f32 %v324
    %vm333 = vweird.f32 %v326
    %vm334 = vmor %vm332, %vm333
    %v335 = vsel %vm334, %v326, %v331
    %v336 = vrsqrt.pop %v325
    %v337 = vmul.f32 %v336, %v325
    %v338 = vmul.f32 %v337, %v336
    %v339 = vmul.f32 0.5, %v338
    %v340 = vsub.f32 1.5, %v339
    %v341 = vmul.f32 %v336, %v340
    %vm342 = vweird.f32 %v325
    %vm343 = vweird.f32 %v336
    %vm344 = vmor %vm342, %vm343
    %v345 = vsel %vm344, %v336, %v341
    %v346 = vmul.f32 %v314, %v335
    %v347 = vmul.f32 %v315, %v345
    %v349 = vperm.slane %v148, 0
    %v351 = vmul.f32 %v346, %v349
    %v352 = vmul.f32 %v347, %v349
    %v354 = vperm.slane %v149, 0
    %v356 = vadd.f32 %v351, %v354
    %v357 = vadd.f32 %v352, %v354
    %v358 = vpack.c.bf16 %v357, %v356
    %v391 = vunpack.c.l.b16 %v152
    %v392 = vunpack.c.h.b16 %v152
    %v393 = vunpack.c.l.b16 %v153
    %v394 = vunpack.c.l.b16 %v154
    %v395 = vunpack.c.h.b16 %v154
    %v396 = vunpack.c.l.b16 %v155
    %v397 = vunpack.c.l.b16 %v156
    %v398 = vunpack.c.h.b16 %v156
    %v399 = vunpack.c.l.b16 %v157
    %v400 = vunpack.c.l.b16 %v158
    %v401 = vunpack.c.h.b16 %v158
    %v402 = vunpack.c.l.b16 %v159
    %v403 = vunpack.c.l.b16 %v160
    %v404 = vunpack.c.h.b16 %v160
    %v405 = vunpack.c.l.b16 %v161
    %v406 = vunpack.c.l.b16 %v162
    %v407 = vunpack.c.h.b16 %v162
    %v408 = vunpack.c.l.b16 %v163
    %v409 = vunpack.c.l.b16 %v164
    %v410 = vunpack.c.h.b16 %v164
    %v411 = vunpack.c.l.b16 %v165
    %v412 = vunpack.c.l.b16 %v166
    %v413 = vunpack.c.h.b16 %v166
    %v414 = vunpack.c.l.b16 %v167
    %v415 = vunpack.c.l.b16 %v168
    %v416 = vunpack.c.h.b16 %v168
    %v417 = vunpack.c.l.b16 %v169
    %v418 = vunpack.c.l.b16 %v170
    %v419 = vunpack.c.h.b16 %v170
    %v420 = vunpack.c.l.b16 %v171
    %v421 = vunpack.c.l.b16 %v172
    %v422 = vunpack.c.h.b16 %v172
    %v423 = vunpack.c.l.b16 %v173
    %v424 = vunpack.c.l.b16 %v174
    %v425 = vunpack.c.h.b16 %v174
    %v426 = vunpack.c.l.b16 %v175
    %v427 = vunpack.c.l.b16 %v176
    %v428 = vunpack.c.h.b16 %v176
    %v429 = vunpack.c.l.b16 %v177
    %v430 = vunpack.c.l.b16 %v178
    %v431 = vunpack.c.h.b16 %v178
    %v432 = vunpack.c.l.b16 %v179
    %v433 = vunpack.c.l.b16 %v180
    %v434 = vunpack.c.h.b16 %v180
    %v435 = vunpack.c.l.b16 %v181
    %v436 = vunpack.c.l.b16 %v182
    %v437 = vunpack.c.h.b16 %v182
    %v438 = vunpack.c.l.b16 %v183
    %v439 = vpack.c.b16 %v394, %v391
    %v440 = vpack.c.b16 %v395, %v392
    %v441 = vpack.c.b16 %v396, %v393
    %v442 = vpack.c.b16 %v400, %v397
    %v443 = vpack.c.b16 %v401, %v398
    %v444 = vpack.c.b16 %v402, %v399
    %v445 = vpack.c.b16 %v406, %v403
    %v446 = vpack.c.b16 %v407, %v404
    %v447 = vpack.c.b16 %v408, %v405
    %v448 = vpack.c.b16 %v412, %v409
    %v449 = vpack.c.b16 %v413, %v410
    %v450 = vpack.c.b16 %v414, %v411
    %v451 = vpack.c.b16 %v418, %v415
    %v452 = vpack.c.b16 %v419, %v416
    %v453 = vpack.c.b16 %v420, %v417
    %v454 = vpack.c.b16 %v424, %v421
    %v455 = vpack.c.b16 %v425, %v422
    %v456 = vpack.c.b16 %v426, %v423
    %v457 = vpack.c.b16 %v430, %v427
    %v458 = vpack.c.b16 %v431, %v428
    %v459 = vpack.c.b16 %v432, %v429
    %v460 = vpack.c.b16 %v436, %v433
    %v461 = vpack.c.b16 %v437, %v434
    %v462 = vpack.c.b16 %v438, %v435
    %487 = vmatpush.bf16.msra.mxu0 %v460
    %488 = vmatpush.bf16.msra.mxu0 %v457
    %489 = vmatpush.bf16.msra.mxu0 %v454
    %490 = vmatpush.bf16.msra.mxu0 %v451
    %491 = vmatpush.bf16.msra.mxu0 %v448
    %492 = vmatpush.bf16.msra.mxu0 %v445
    %493 = vmatpush.bf16.msra.mxu0 %v442
    %494 = vmatpush.bf16.msra.mxu0 %v439
    %495 = vmatmul.bf16.gmra.mxu0 %v358
    %v496 = vpop.f32.mrf.mxu0
    %v497 = vadd.f32 0.0, %v496
    %v498 = vpop.f32.mrf.mxu0
    %v499 = vadd.f32 0.0, %v498
    %500 = vdwg.mxu0
    %501 = vmatpush.bf16.msra.mxu0 %v461
    %502 = vmatpush.bf16.msra.mxu0 %v458
    %503 = vmatpush.bf16.msra.mxu0 %v455
    %504 = vmatpush.bf16.msra.mxu0 %v452
    %505 = vmatpush.bf16.msra.mxu0 %v449
    %506 = vmatpush.bf16.msra.mxu0 %v446
    %507 = vmatpush.bf16.msra.mxu0 %v443
    %508 = vmatpush.bf16.msra.mxu0 %v440
    %509 = vmatmul.bf16.gmra.mxu0 %v358
    %v510 = vpop.f32.mrf.mxu0
    %v511 = vadd.f32 0.0, %v510
    %v512 = vpop.f32.mrf.mxu0
    %v513 = vadd.f32 0.0, %v512
    %514 = vdwg.mxu0
    %515 = vmatpush.bf16.msra.mxu0 %v462
    %516 = vmatpush.bf16.msra.mxu0 %v459
    %517 = vmatpush.bf16.msra.mxu0 %v456
    %518 = vmatpush.bf16.msra.mxu0 %v453
    %519 = vmatpush.bf16.msra.mxu0 %v450
    %520 = vmatpush.bf16.msra.mxu0 %v447
    %521 = vmatpush.bf16.msra.mxu0 %v444
    %522 = vmatpush.bf16.msra.mxu0 %v441
    %523 = vmatmul.bf16.gmra.mxu0 %v358
    %v524 = vpop.f32.mrf.mxu0
    %v525 = vadd.f32 0.0, %v524
    %v526 = vpop.f32.mrf.mxu0
    %v527 = vadd.f32 0.0, %v526
    %528 = vdwg.mxu0
    %v529 = vmul.f32 %v497, 0.17677669
    %v530 = vmul.f32 %v499, 0.17677669
    %v531 = vpack.c.bf16 %v529, %v529
    %v532 = vpack.c.bf16 %v530, %v530
    %v533 = vpack.c.bf16 %v511, %v511
    %v534 = vpack.c.bf16 %v513, %v513
    %v535 = vpack.c.bf16 %v525, %v525
    %v536 = vpack.c.bf16 %v527, %v527
    %vm537 = vcmask 261120
    %v539 = vsel %vm537, %v531, 0
    %v542 = vsel %vm537, %v533, 0
    %544 = vmatpush.bf16.xpose.msra.mxu0 0
    %545 = vmatpush.bf16.xpose.msra.mxu0 0
    %546 = vmatpush.bf16.xpose.msra.mxu0 0
    %547 = vmatpush.bf16.xpose.msra.mxu0 0
    %548 = vmatpush.bf16.xpose.msra.mxu0 0
    %549 = vmatpush.bf16.xpose.msra.mxu0 0
    %550 = vmatpush.bf16.xpose.msra.mxu0 0
    %551 = vmatpush.bf16.xpose.msra.mxu0 %v542
    %552 = vmatmul.bf16.gmra.mxu0 %v539
    %v553 = vpop.f32.mrf.mxu0
    %v554 = vadd.f32 0.0, %v553
    %v555 = vpop.f32.mrf.mxu0
    %556 = vdwg.mxu0
    %v558 = vsel %vm537, %v532, 0
    %v561 = vsel %vm537, %v534, 0
    %563 = vmatpush.bf16.xpose.msra.mxu0 0
    %564 = vmatpush.bf16.xpose.msra.mxu0 0
    %565 = vmatpush.bf16.xpose.msra.mxu0 0
    %566 = vmatpush.bf16.xpose.msra.mxu0 0
    %567 = vmatpush.bf16.xpose.msra.mxu0 0
    %568 = vmatpush.bf16.xpose.msra.mxu0 0
    %569 = vmatpush.bf16.xpose.msra.mxu0 0
    %570 = vmatpush.bf16.xpose.msra.mxu0 %v561
    %571 = vmatmul.bf16.gmra.mxu0 %v558
    %v572 = vpop.f32.mrf.mxu0
    %v573 = vadd.f32 0.0, %v572
    %v574 = vpop.f32.mrf.mxu0
    %575 = vdwg.mxu0
    %vm576 = vcmask 64512
    %v577 = vsel %vm576, %v554, -inf
    %578 = vmax.xlane.f32.xlu0 %v577
    %v579 = vpop.xlane.xlu0 %578
    %v580 = vsel %vm576, %v573, -inf
    %581 = vmax.xlane.f32.xlu0 %v580
    %v582 = vpop.xlane.xlu0 %581
    %v583 = vsub.f32 %v554, %v579
    %v584 = vsub.f32 %v573, %v582
    %v585 = vmul.f32 %v583, 1.442695
    %v586 = vpow.pop %v585
    %v587 = vmul.f32 %v584, 1.442695
    %v588 = vpow.pop %v587
    %v589 = vsel %vm576, %v586, 0.0
    %590 = vadd.xlane.f32.xlu0 %v589
    %v591 = vpop.xlane.xlu0 %590
    %v592 = vsel %vm576, %v588, 0.0
    %593 = vadd.xlane.f32.xlu0 %v592
    %v594 = vpop.xlane.xlu0 %593
    %v595 = vrcp.pop %v591
    %v596 = vrcp.pop %v594
    %v597 = vmul.f32 %v586, %v595
    %v598 = vmul.f32 %v588, %v596
    %v599 = vpack.c.bf16 %v597, %v597
    %v600 = vpack.c.bf16 %v598, %v598
    %v602 = vsel %vm576, %v599, 0
    %vm604 = vcmask 1043456
    %v606 = vsel %vm604, %v535, 0
    %608 = vmatpush.bf16.msra.mxu0 0
    %609 = vmatpush.bf16.msra.mxu0 0
    %610 = vmatpush.bf16.msra.mxu0 0
    %611 = vmatpush.bf16.msra.mxu0 0
    %612 = vmatpush.bf16.msra.mxu0 0
    %613 = vmatpush.bf16.msra.mxu0 0
    %614 = vmatpush.bf16.msra.mxu0 0
    %615 = vmatpush.bf16.msra.mxu0 %v606
    %616 = vmatmul.bf16.gmra.mxu0 %v602
    %v617 = vpop.f32.mrf.mxu0
    %v618 = vadd.f32 0.0, %v617
    %v619 = vpop.f32.mrf.mxu0
    %620 = vdwg.mxu0
    %v622 = vsel %vm576, %v600, 0
    %v625 = vsel %vm604, %v536, 0
    %627 = vmatpush.bf16.msra.mxu0 0
    %628 = vmatpush.bf16.msra.mxu0 0
    %629 = vmatpush.bf16.msra.mxu0 0
    %630 = vmatpush.bf16.msra.mxu0 0
    %631 = vmatpush.bf16.msra.mxu0 0
    %632 = vmatpush.bf16.msra.mxu0 0
    %633 = vmatpush.bf16.msra.mxu0 0
    %634 = vmatpush.bf16.msra.mxu0 %v625
    %635 = vmatmul.bf16.gmra.mxu0 %v622
    %v636 = vpop.f32.mrf.mxu0
    %v637 = vadd.f32 0.0, %v636
    %v638 = vpop.f32.mrf.mxu0
    %639 = vdwg.mxu0
    %v640 = vpack.c.bf16 %v637, %v618
    %v642 = vunpack.c.l.b16 %v531
    %v643 = vpack.c.b16 %v642, %v642
    %644 = vrot.lane.b32.xlu0 %v643, 96
    %v645 = vpop.permute.xlu0 %644
    %v647 = vunpack.c.l.b16 %v533
    %v648 = vpack.c.b16 %v647, %v647
    %649 = vrot.lane.b32.xlu0 %v648, 96
    %v650 = vpop.permute.xlu0 %649
    %v652 = vsel %vm537, %v645, 0
    %v655 = vsel %vm537, %v650, 0
    %657 = vmatpush.bf16.xpose.msra.mxu0 0
    %658 = vmatpush.bf16.xpose.msra.mxu0 0
    %659 = vmatpush.bf16.xpose.msra.mxu0 0
    %660 = vmatpush.bf16.xpose.msra.mxu0 0
    %661 = vmatpush.bf16.xpose.msra.mxu0 0
    %662 = vmatpush.bf16.xpose.msra.mxu0 0
    %663 = vmatpush.bf16.xpose.msra.mxu0 0
    %664 = vmatpush.bf16.xpose.msra.mxu0 %v655
    %665 = vmatmul.bf16.gmra.mxu0 %v652
    %v666 = vpop.f32.mrf.mxu0
    %v667 = vadd.f32 0.0, %v666
    %v668 = vpop.f32.mrf.mxu0
    %669 = vdwg.mxu0
    %v671 = vunpack.c.l.b16 %v532
    %v672 = vpack.c.b16 %v671, %v671
    %673 = vrot.lane.b32.xlu0 %v672, 96
    %v674 = vpop.permute.xlu0 %673
    %v676 = vunpack.c.l.b16 %v534
    %v677 = vpack.c.b16 %v676, %v676
    %678 = vrot.lane.b32.xlu0 %v677, 96
    %v679 = vpop.permute.xlu0 %678
    %v681 = vsel %vm537, %v674, 0
    %v684 = vsel %vm537, %v679, 0
    %686 = vmatpush.bf16.xpose.msra.mxu0 0
    %687 = vmatpush.bf16.xpose.msra.mxu0 0
    %688 = vmatpush.bf16.xpose.msra.mxu0 0
    %689 = vmatpush.bf16.xpose.msra.mxu0 0
    %690 = vmatpush.bf16.xpose.msra.mxu0 0
    %691 = vmatpush.bf16.xpose.msra.mxu0 0
    %692 = vmatpush.bf16.xpose.msra.mxu0 0
    %693 = vmatpush.bf16.xpose.msra.mxu0 %v684
    %694 = vmatmul.bf16.gmra.mxu0 %v681
    %v695 = vpop.f32.mrf.mxu0
    %v696 = vadd.f32 0.0, %v695
    %v697 = vpop.f32.mrf.mxu0
    %698 = vdwg.mxu0
    %v699 = vsel %vm576, %v667, -inf
    %700 = vmax.xlane.f32.xlu0 %v699
    %v701 = vpop.xlane.xlu0 %700
    %v702 = vsel %vm576, %v696, -inf
    %703 = vmax.xlane.f32.xlu0 %v702
    %v704 = vpop.xlane.xlu0 %703
    %v705 = vsub.f32 %v667, %v701
    %v706 = vsub.f32 %v696, %v704
    %v707 = vmul.f32 %v705, 1.442695
    %v708 = vpow.pop %v707
    %v709 = vmul.f32 %v706, 1.442695
    %v710 = vpow.pop %v709
    %v711 = vsel %vm576, %v708, 0.0
    %712 = vadd.xlane.f32.xlu0 %v711
    %v713 = vpop.xlane.xlu0 %712
    %v714 = vsel %vm576, %v710, 0.0
    %715 = vadd.xlane.f32.xlu0 %v714
    %v716 = vpop.xlane.xlu0 %715
    %v717 = vrcp.pop %v713
    %v718 = vrcp.pop %v716
    %v719 = vmul.f32 %v708, %v717
    %v720 = vmul.f32 %v710, %v718
    %v721 = vpack.c.bf16 %v719, %v719
    %v722 = vpack.c.bf16 %v720, %v720
    %v724 = vunpack.c.l.b16 %v535
    %v725 = vpack.c.b16 %v724, %v724
    %726 = vrot.lane.b32.xlu0 %v725, 96
    %v727 = vpop.permute.xlu0 %726
    %v729 = vsel %vm576, %v721, 0
    %v732 = vsel %vm604, %v727, 0
    %734 = vmatpush.bf16.msra.mxu0 0
    %735 = vmatpush.bf16.msra.mxu0 0
    %736 = vmatpush.bf16.msra.mxu0 0
    %737 = vmatpush.bf16.msra.mxu0 0
    %738 = vmatpush.bf16.msra.mxu0 0
    %739 = vmatpush.bf16.msra.mxu0 0
    %740 = vmatpush.bf16.msra.mxu0 0
    %741 = vmatpush.bf16.msra.mxu0 %v732
    %742 = vmatmul.bf16.gmra.mxu0 %v729
    %v743 = vpop.f32.mrf.mxu0
    %v744 = vadd.f32 0.0, %v743
    %v745 = vpop.f32.mrf.mxu0
    %746 = vdwg.mxu0
    %v748 = vunpack.c.l.b16 %v536
    %v749 = vpack.c.b16 %v748, %v748
    %750 = vrot.lane.b32.xlu0 %v749, 96
    %v751 = vpop.permute.xlu0 %750
    %v753 = vsel %vm576, %v722, 0
    %v756 = vsel %vm604, %v751, 0
    %758 = vmatpush.bf16.msra.mxu0 0
    %759 = vmatpush.bf16.msra.mxu0 0
    %760 = vmatpush.bf16.msra.mxu0 0
    %761 = vmatpush.bf16.msra.mxu0 0
    %762 = vmatpush.bf16.msra.mxu0 0
    %763 = vmatpush.bf16.msra.mxu0 0
    %764 = vmatpush.bf16.msra.mxu0 0
    %765 = vmatpush.bf16.msra.mxu0 %v756
    %766 = vmatmul.bf16.gmra.mxu0 %v753
    %v767 = vpop.f32.mrf.mxu0
    %v768 = vadd.f32 0.0, %v767
    %v769 = vpop.f32.mrf.mxu0
    %770 = vdwg.mxu0
    %v771 = vpack.c.bf16 %v768, %v744
    %v776 = vunpack.c.l.b16 %v188
    %v777 = vunpack.c.l.b16 %v189
    %v778 = vunpack.c.l.b16 %v190
    %v779 = vunpack.c.l.b16 %v191
    %v780 = vpack.c.b16 %v777, %v776
    %v781 = vpack.c.b16 %v779, %v778
    %v785 = vsel %vm537, %v771, 0
    %787 = vmatpush.bf16.msra.mxu0 0
    %788 = vmatpush.bf16.msra.mxu0 0
    %789 = vmatpush.bf16.msra.mxu0 0
    %790 = vmatpush.bf16.msra.mxu0 0
    %791 = vmatpush.bf16.msra.mxu0 0
    %792 = vmatpush.bf16.msra.mxu0 0
    %793 = vmatpush.bf16.msra.mxu0 %v781
    %794 = vmatpush.bf16.msra.mxu0 %v780
    %795 = vmatmul.bf16.gmra.mxu0 %v785
    %v796 = vpop.f32.mrf.mxu0
    %v797 = vadd.f32 0.0, %v796
    %v798 = vpop.f32.mrf.mxu0
    %v799 = vadd.f32 0.0, %v798
    %800 = vdwg.mxu0
    %v805 = vunpack.c.l.b16 %v184
    %v806 = vunpack.c.l.b16 %v185
    %v807 = vunpack.c.l.b16 %v186
    %v808 = vunpack.c.l.b16 %v187
    %v809 = vpack.c.b16 %v806, %v805
    %v810 = vpack.c.b16 %v808, %v807
    %v814 = vsel %vm537, %v640, 0
    %816 = vmatpush.bf16.msra.mxu0 0
    %817 = vmatpush.bf16.msra.mxu0 0
    %818 = vmatpush.bf16.msra.mxu0 0
    %819 = vmatpush.bf16.msra.mxu0 0
    %820 = vmatpush.bf16.msra.mxu0 0
    %821 = vmatpush.bf16.msra.mxu0 0
    %822 = vmatpush.bf16.msra.mxu0 %v810
    %823 = vmatpush.bf16.msra.mxu0 %v809
    %824 = vmatmul.bf16.gmra.mxu0 %v814
    %v825 = vpop.f32.mrf.mxu0
    %v826 = vadd.f32 %v797, %v825
    %v827 = vpop.f32.mrf.mxu0
    %v828 = vadd.f32 %v799, %v827
    %829 = vdwg.mxu0
    %830 = vrot.lane.b32.xlu0 %v643, 64
    %v831 = vpop.permute.xlu0 %830
    %832 = vrot.lane.b32.xlu0 %v648, 64
    %v833 = vpop.permute.xlu0 %832
    %v835 = vsel %vm537, %v831, 0
    %v838 = vsel %vm537, %v833, 0
    %840 = vmatpush.bf16.xpose.msra.mxu0 0
    %841 = vmatpush.bf16.xpose.msra.mxu0 0
    %842 = vmatpush.bf16.xpose.msra.mxu0 0
    %843 = vmatpush.bf16.xpose.msra.mxu0 0
    %844 = vmatpush.bf16.xpose.msra.mxu0 0
    %845 = vmatpush.bf16.xpose.msra.mxu0 0
    %846 = vmatpush.bf16.xpose.msra.mxu0 0
    %847 = vmatpush.bf16.xpose.msra.mxu0 %v838
    %848 = vmatmul.bf16.gmra.mxu0 %v835
    %v849 = vpop.f32.mrf.mxu0
    %v850 = vadd.f32 0.0, %v849
    %v851 = vpop.f32.mrf.mxu0
    %852 = vdwg.mxu0
    %853 = vrot.lane.b32.xlu0 %v672, 64
    %v854 = vpop.permute.xlu0 %853
    %855 = vrot.lane.b32.xlu0 %v677, 64
    %v856 = vpop.permute.xlu0 %855
    %v858 = vsel %vm537, %v854, 0
    %v861 = vsel %vm537, %v856, 0
    %863 = vmatpush.bf16.xpose.msra.mxu0 0
    %864 = vmatpush.bf16.xpose.msra.mxu0 0
    %865 = vmatpush.bf16.xpose.msra.mxu0 0
    %866 = vmatpush.bf16.xpose.msra.mxu0 0
    %867 = vmatpush.bf16.xpose.msra.mxu0 0
    %868 = vmatpush.bf16.xpose.msra.mxu0 0
    %869 = vmatpush.bf16.xpose.msra.mxu0 0
    %870 = vmatpush.bf16.xpose.msra.mxu0 %v861
    %871 = vmatmul.bf16.gmra.mxu0 %v858
    %v872 = vpop.f32.mrf.mxu0
    %v873 = vadd.f32 0.0, %v872
    %v874 = vpop.f32.mrf.mxu0
    %875 = vdwg.mxu0
    %v876 = vsel %vm576, %v850, -inf
    %877 = vmax.xlane.f32.xlu0 %v876
    %v878 = vpop.xlane.xlu0 %877
    %v879 = vsel %vm576, %v873, -inf
    %880 = vmax.xlane.f32.xlu0 %v879
    %v881 = vpop.xlane.xlu0 %880
    %v882 = vsub.f32 %v850, %v878
    %v883 = vsub.f32 %v873, %v881
    %v884 = vmul.f32 %v882, 1.442695
    %v885 = vpow.pop %v884
    %v886 = vmul.f32 %v883, 1.442695
    %v887 = vpow.pop %v886
    %v888 = vsel %vm576, %v885, 0.0
    %889 = vadd.xlane.f32.xlu0 %v888
    %v890 = vpop.xlane.xlu0 %889
    %v891 = vsel %vm576, %v887, 0.0
    %892 = vadd.xlane.f32.xlu0 %v891
    %v893 = vpop.xlane.xlu0 %892
    %v894 = vrcp.pop %v890
    %v895 = vrcp.pop %v893
    %v896 = vmul.f32 %v885, %v894
    %v897 = vmul.f32 %v887, %v895
    %v898 = vpack.c.bf16 %v896, %v896
    %v899 = vpack.c.bf16 %v897, %v897
    %900 = vrot.lane.b32.xlu0 %v725, 64
    %v901 = vpop.permute.xlu0 %900
    %v903 = vsel %vm576, %v898, 0
    %v906 = vsel %vm604, %v901, 0
    %908 = vmatpush.bf16.msra.mxu0 0
    %909 = vmatpush.bf16.msra.mxu0 0
    %910 = vmatpush.bf16.msra.mxu0 0
    %911 = vmatpush.bf16.msra.mxu0 0
    %912 = vmatpush.bf16.msra.mxu0 0
    %913 = vmatpush.bf16.msra.mxu0 0
    %914 = vmatpush.bf16.msra.mxu0 0
    %915 = vmatpush.bf16.msra.mxu0 %v906
    %916 = vmatmul.bf16.gmra.mxu0 %v903
    %v917 = vpop.f32.mrf.mxu0
    %v918 = vadd.f32 0.0, %v917
    %v919 = vpop.f32.mrf.mxu0
    %920 = vdwg.mxu0
    %921 = vrot.lane.b32.xlu0 %v749, 64
    %v922 = vpop.permute.xlu0 %921
    %v924 = vsel %vm576, %v899, 0
    %v927 = vsel %vm604, %v922, 0
    %929 = vmatpush.bf16.msra.mxu0 0
    %930 = vmatpush.bf16.msra.mxu0 0
    %931 = vmatpush.bf16.msra.mxu0 0
    %932 = vmatpush.bf16.msra.mxu0 0
    %933 = vmatpush.bf16.msra.mxu0 0
    %934 = vmatpush.bf16.msra.mxu0 0
    %935 = vmatpush.bf16.msra.mxu0 0
    %936 = vmatpush.bf16.msra.mxu0 %v927
    %937 = vmatmul.bf16.gmra.mxu0 %v924
    %v938 = vpop.f32.mrf.mxu0
    %v939 = vadd.f32 0.0, %v938
    %v940 = vpop.f32.mrf.mxu0
    %941 = vdwg.mxu0
    %v942 = vpack.c.bf16 %v939, %v918
    %v947 = vunpack.c.l.b16 %v192
    %v948 = vunpack.c.l.b16 %v193
    %v949 = vunpack.c.l.b16 %v194
    %v950 = vunpack.c.l.b16 %v195
    %v951 = vpack.c.b16 %v948, %v947
    %v952 = vpack.c.b16 %v950, %v949
    %v956 = vsel %vm537, %v942, 0
    %958 = vmatpush.bf16.msra.mxu0 0
    %959 = vmatpush.bf16.msra.mxu0 0
    %960 = vmatpush.bf16.msra.mxu0 0
    %961 = vmatpush.bf16.msra.mxu0 0
    %962 = vmatpush.bf16.msra.mxu0 0
    %963 = vmatpush.bf16.msra.mxu0 0
    %964 = vmatpush.bf16.msra.mxu0 %v952
    %965 = vmatpush.bf16.msra.mxu0 %v951
    %966 = vmatmul.bf16.gmra.mxu0 %v956
    %v967 = vpop.f32.mrf.mxu0
    %v968 = vadd.f32 0.0, %v967
    %v969 = vpop.f32.mrf.mxu0
    %v970 = vadd.f32 0.0, %v969
    %971 = vdwg.mxu0
    %v972 = vadd.f32 %v826, %v968
    %v973 = vadd.f32 %v828, %v970
    %974 = vrot.lane.b32.xlu0 %v643, 32
    %v975 = vpop.permute.xlu0 %974
    %976 = vrot.lane.b32.xlu0 %v648, 32
    %v977 = vpop.permute.xlu0 %976
    %v979 = vsel %vm537, %v975, 0
    %v982 = vsel %vm537, %v977, 0
    %984 = vmatpush.bf16.xpose.msra.mxu0 0
    %985 = vmatpush.bf16.xpose.msra.mxu0 0
    %986 = vmatpush.bf16.xpose.msra.mxu0 0
    %987 = vmatpush.bf16.xpose.msra.mxu0 0
    %988 = vmatpush.bf16.xpose.msra.mxu0 0
    %989 = vmatpush.bf16.xpose.msra.mxu0 0
    %990 = vmatpush.bf16.xpose.msra.mxu0 0
    %991 = vmatpush.bf16.xpose.msra.mxu0 %v982
    %992 = vmatmul.bf16.gmra.mxu0 %v979
    %v993 = vpop.f32.mrf.mxu0
    %v994 = vadd.f32 0.0, %v993
    %v995 = vpop.f32.mrf.mxu0
    %996 = vdwg.mxu0
    %997 = vrot.lane.b32.xlu0 %v672, 32
    %v998 = vpop.permute.xlu0 %997
    %999 = vrot.lane.b32.xlu0 %v677, 32
    %v1000 = vpop.permute.xlu0 %999
    %v1002 = vsel %vm537, %v998, 0
    %v1005 = vsel %vm537, %v1000, 0
    %1007 = vmatpush.bf16.xpose.msra.mxu0 0
    %1008 = vmatpush.bf16.xpose.msra.mxu0 0
    %1009 = vmatpush.bf16.xpose.msra.mxu0 0
    %1010 = vmatpush.bf16.xpose.msra.mxu0 0
    %1011 = vmatpush.bf16.xpose.msra.mxu0 0
    %1012 = vmatpush.bf16.xpose.msra.mxu0 0
    %1013 = vmatpush.bf16.xpose.msra.mxu0 0
    %1014 = vmatpush.bf16.xpose.msra.mxu0 %v1005
    %1015 = vmatmul.bf16.gmra.mxu0 %v1002
    %v1016 = vpop.f32.mrf.mxu0
    %v1017 = vadd.f32 0.0, %v1016
    %v1018 = vpop.f32.mrf.mxu0
    %1019 = vdwg.mxu0
    %v1020 = vsel %vm576, %v994, -inf
    %1021 = vmax.xlane.f32.xlu0 %v1020
    %v1022 = vpop.xlane.xlu0 %1021
    %v1023 = vsel %vm576, %v1017, -inf
    %1024 = vmax.xlane.f32.xlu0 %v1023
    %v1025 = vpop.xlane.xlu0 %1024
    %v1026 = vsub.f32 %v994, %v1022
    %v1027 = vsub.f32 %v1017, %v1025
    %v1028 = vmul.f32 %v1026, 1.442695
    %v1029 = vpow.pop %v1028
    %v1030 = vmul.f32 %v1027, 1.442695
    %v1031 = vpow.pop %v1030
    %v1032 = vsel %vm576, %v1029, 0.0
    %1033 = vadd.xlane.f32.xlu0 %v1032
    %v1034 = vpop.xlane.xlu0 %1033
    %v1035 = vsel %vm576, %v1031, 0.0
    %1036 = vadd.xlane.f32.xlu0 %v1035
    %v1037 = vpop.xlane.xlu0 %1036
    %v1038 = vrcp.pop %v1034
    %v1039 = vrcp.pop %v1037
    %v1040 = vmul.f32 %v1029, %v1038
    %v1041 = vmul.f32 %v1031, %v1039
    %v1042 = vpack.c.bf16 %v1040, %v1040
    %v1043 = vpack.c.bf16 %v1041, %v1041
    %1044 = vrot.lane.b32.xlu0 %v725, 32
    %v1045 = vpop.permute.xlu0 %1044
    %v1047 = vsel %vm576, %v1042, 0
    %v1050 = vsel %vm604, %v1045, 0
    %1052 = vmatpush.bf16.msra.mxu0 0
    %1053 = vmatpush.bf16.msra.mxu0 0
    %1054 = vmatpush.bf16.msra.mxu0 0
    %1055 = vmatpush.bf16.msra.mxu0 0
    %1056 = vmatpush.bf16.msra.mxu0 0
    %1057 = vmatpush.bf16.msra.mxu0 0
    %1058 = vmatpush.bf16.msra.mxu0 0
    %1059 = vmatpush.bf16.msra.mxu0 %v1050
    %1060 = vmatmul.bf16.gmra.mxu0 %v1047
    %v1061 = vpop.f32.mrf.mxu0
    %v1062 = vadd.f32 0.0, %v1061
    %v1063 = vpop.f32.mrf.mxu0
    %1064 = vdwg.mxu0
    %1065 = vrot.lane.b32.xlu0 %v749, 32
    %v1066 = vpop.permute.xlu0 %1065
    %v1068 = vsel %vm576, %v1043, 0
    %v1071 = vsel %vm604, %v1066, 0
    %1073 = vmatpush.bf16.msra.mxu0 0
    %1074 = vmatpush.bf16.msra.mxu0 0
    %1075 = vmatpush.bf16.msra.mxu0 0
    %1076 = vmatpush.bf16.msra.mxu0 0
    %1077 = vmatpush.bf16.msra.mxu0 0
    %1078 = vmatpush.bf16.msra.mxu0 0
    %1079 = vmatpush.bf16.msra.mxu0 0
    %1080 = vmatpush.bf16.msra.mxu0 %v1071
    %1081 = vmatmul.bf16.gmra.mxu0 %v1068
    %v1082 = vpop.f32.mrf.mxu0
    %v1083 = vadd.f32 0.0, %v1082
    %v1084 = vpop.f32.mrf.mxu0
    %1085 = vdwg.mxu0
    %v1086 = vpack.c.bf16 %v1083, %v1062
    %v1091 = vunpack.c.l.b16 %v196
    %v1092 = vunpack.c.l.b16 %v197
    %v1093 = vunpack.c.l.b16 %v198
    %v1094 = vunpack.c.l.b16 %v199
    %v1095 = vpack.c.b16 %v1092, %v1091
    %v1096 = vpack.c.b16 %v1094, %v1093
    %v1100 = vsel %vm537, %v1086, 0
    %1102 = vmatpush.bf16.msra.mxu0 0
    %1103 = vmatpush.bf16.msra.mxu0 0
    %1104 = vmatpush.bf16.msra.mxu0 0
    %1105 = vmatpush.bf16.msra.mxu0 0
    %1106 = vmatpush.bf16.msra.mxu0 0
    %1107 = vmatpush.bf16.msra.mxu0 0
    %1108 = vmatpush.bf16.msra.mxu0 %v1096
    %1109 = vmatpush.bf16.msra.mxu0 %v1095
    %1110 = vmatmul.bf16.gmra.mxu0 %v1100
    %v1111 = vpop.f32.mrf.mxu0
    %v1112 = vadd.f32 0.0, %v1111
    %v1113 = vpop.f32.mrf.mxu0
    %v1114 = vadd.f32 0.0, %v1113
    %1115 = vdwg.mxu0
    %v1116 = vadd.f32 %v972, %v1112
    %v1117 = vadd.f32 %v973, %v1114
    %v1118 = vadd.f32 %v299, %v1116
    %v1119 = vadd.f32 %v300, %v1117
    %v1121 = vperm.slane %v200, 0
    %v1123 = vadd.f32 %v1118, %v1121
    %v1124 = vadd.f32 %v1119, %v1121
    %1125 = vadd.xlane.f32.xlu0 %v1123
    %v1126 = vpop.xlane.xlu0 %1125
    %1127 = vadd.xlane.f32.xlu0 %v1124
    %v1128 = vpop.xlane.xlu0 %1127
    %v1129 = vmul.f32 %v1126, %v311
    %v1130 = vmul.f32 %v1128, %v311
    %v1131 = vsub.f32 %v1123, %v1129
    %v1132 = vsub.f32 %v1124, %v1130
    %v1133 = vmul.f32 %v1131, %v1131
    %v1134 = vmul.f32 %v1132, %v1132
    %1135 = vadd.xlane.f32.xlu0 %v1133
    %v1136 = vpop.xlane.xlu0 %1135
    %1137 = vadd.xlane.f32.xlu0 %v1134
    %v1138 = vpop.xlane.xlu0 %1137
    %v1139 = vmul.f32 %v1136, %v311
    %v1140 = vmul.f32 %v1138, %v311
    %v1141 = vadd.f32 %v1139, 1e-05
    %v1142 = vadd.f32 %v1140, 1e-05
    %v1143 = vrsqrt.pop %v1141
    %v1144 = vmul.f32 %v1143, %v1141
    %v1145 = vmul.f32 %v1144, %v1143
    %v1146 = vmul.f32 0.5, %v1145
    %v1147 = vsub.f32 1.5, %v1146
    %v1148 = vmul.f32 %v1143, %v1147
    %vm1149 = vweird.f32 %v1141
    %vm1150 = vweird.f32 %v1143
    %vm1151 = vmor %vm1149, %vm1150
    %v1152 = vsel %vm1151, %v1143, %v1148
    %v1153 = vrsqrt.pop %v1142
    %v1154 = vmul.f32 %v1153, %v1142
    %v1155 = vmul.f32 %v1154, %v1153
    %v1156 = vmul.f32 0.5, %v1155
    %v1157 = vsub.f32 1.5, %v1156
    %v1158 = vmul.f32 %v1153, %v1157
    %vm1159 = vweird.f32 %v1142
    %vm1160 = vweird.f32 %v1153
    %vm1161 = vmor %vm1159, %vm1160
    %v1162 = vsel %vm1161, %v1153, %v1158
    %v1163 = vmul.f32 %v1131, %v1152
    %v1164 = vmul.f32 %v1132, %v1162
    %v1166 = vperm.slane %v150, 0
    %v1168 = vmul.f32 %v1163, %v1166
    %v1169 = vmul.f32 %v1164, %v1166
    %v1171 = vperm.slane %v151, 0
    %v1173 = vadd.f32 %v1168, %v1171
    %v1174 = vadd.f32 %v1169, %v1171
    %v1175 = vpack.c.bf16 %v1174, %v1173
    %v1177 = vperm.slane %v233, 0
    %v1178 = vperm.slane %v233, 1
    %v1179 = vperm.slane %v233, 2
    %v1180 = vperm.slane %v233, 3
    %v1217 = vunpack.c.l.b16 %v201
    %v1218 = vunpack.c.h.b16 %v201
    %v1219 = vunpack.c.l.b16 %v202
    %v1220 = vunpack.c.h.b16 %v202
    %v1221 = vunpack.c.l.b16 %v203
    %v1222 = vunpack.c.h.b16 %v203
    %v1223 = vunpack.c.l.b16 %v204
    %v1224 = vunpack.c.h.b16 %v204
    %v1225 = vunpack.c.l.b16 %v205
    %v1226 = vunpack.c.h.b16 %v205
    %v1227 = vunpack.c.l.b16 %v206
    %v1228 = vunpack.c.h.b16 %v206
    %v1229 = vunpack.c.l.b16 %v207
    %v1230 = vunpack.c.h.b16 %v207
    %v1231 = vunpack.c.l.b16 %v208
    %v1232 = vunpack.c.h.b16 %v208
    %v1233 = vunpack.c.l.b16 %v209
    %v1234 = vunpack.c.h.b16 %v209
    %v1235 = vunpack.c.l.b16 %v210
    %v1236 = vunpack.c.h.b16 %v210
    %v1237 = vunpack.c.l.b16 %v211
    %v1238 = vunpack.c.h.b16 %v211
    %v1239 = vunpack.c.l.b16 %v212
    %v1240 = vunpack.c.h.b16 %v212
    %v1241 = vunpack.c.l.b16 %v213
    %v1242 = vunpack.c.h.b16 %v213
    %v1243 = vunpack.c.l.b16 %v214
    %v1244 = vunpack.c.h.b16 %v214
    %v1245 = vunpack.c.l.b16 %v215
    %v1246 = vunpack.c.h.b16 %v215
    %v1247 = vunpack.c.l.b16 %v216
    %v1248 = vunpack.c.h.b16 %v216
    %v1249 = vunpack.c.l.b16 %v217
    %v1250 = vunpack.c.h.b16 %v217
    %v1251 = vunpack.c.l.b16 %v218
    %v1252 = vunpack.c.h.b16 %v218
    %v1253 = vunpack.c.l.b16 %v219
    %v1254 = vunpack.c.h.b16 %v219
    %v1255 = vunpack.c.l.b16 %v220
    %v1256 = vunpack.c.h.b16 %v220
    %v1257 = vunpack.c.l.b16 %v221
    %v1258 = vunpack.c.h.b16 %v221
    %v1259 = vunpack.c.l.b16 %v222
    %v1260 = vunpack.c.h.b16 %v222
    %v1261 = vunpack.c.l.b16 %v223
    %v1262 = vunpack.c.h.b16 %v223
    %v1263 = vunpack.c.l.b16 %v224
    %v1264 = vunpack.c.h.b16 %v224
    %v1265 = vunpack.c.l.b16 %v225
    %v1266 = vunpack.c.h.b16 %v225
    %v1267 = vunpack.c.l.b16 %v226
    %v1268 = vunpack.c.h.b16 %v226
    %v1269 = vunpack.c.l.b16 %v227
    %v1270 = vunpack.c.h.b16 %v227
    %v1271 = vunpack.c.l.b16 %v228
    %v1272 = vunpack.c.h.b16 %v228
    %v1273 = vunpack.c.l.b16 %v229
    %v1274 = vunpack.c.h.b16 %v229
    %v1275 = vunpack.c.l.b16 %v230
    %v1276 = vunpack.c.h.b16 %v230
    %v1277 = vunpack.c.l.b16 %v231
    %v1278 = vunpack.c.h.b16 %v231
    %v1279 = vunpack.c.l.b16 %v232
    %v1280 = vunpack.c.h.b16 %v232
    %v1281 = vpack.c.b16 %v1221, %v1217
    %v1282 = vpack.c.b16 %v1222, %v1218
    %v1283 = vpack.c.b16 %v1223, %v1219
    %v1284 = vpack.c.b16 %v1224, %v1220
    %v1285 = vpack.c.b16 %v1229, %v1225
    %v1286 = vpack.c.b16 %v1230, %v1226
    %v1287 = vpack.c.b16 %v1231, %v1227
    %v1288 = vpack.c.b16 %v1232, %v1228
    %v1289 = vpack.c.b16 %v1237, %v1233
    %v1290 = vpack.c.b16 %v1238, %v1234
    %v1291 = vpack.c.b16 %v1239, %v1235
    %v1292 = vpack.c.b16 %v1240, %v1236
    %v1293 = vpack.c.b16 %v1245, %v1241
    %v1294 = vpack.c.b16 %v1246, %v1242
    %v1295 = vpack.c.b16 %v1247, %v1243
    %v1296 = vpack.c.b16 %v1248, %v1244
    %v1297 = vpack.c.b16 %v1253, %v1249
    %v1298 = vpack.c.b16 %v1254, %v1250
    %v1299 = vpack.c.b16 %v1255, %v1251
    %v1300 = vpack.c.b16 %v1256, %v1252
    %v1301 = vpack.c.b16 %v1261, %v1257
    %v1302 = vpack.c.b16 %v1262, %v1258
    %v1303 = vpack.c.b16 %v1263, %v1259
    %v1304 = vpack.c.b16 %v1264, %v1260
    %v1305 = vpack.c.b16 %v1269, %v1265
    %v1306 = vpack.c.b16 %v1270, %v1266
    %v1307 = vpack.c.b16 %v1271, %v1267
    %v1308 = vpack.c.b16 %v1272, %v1268
    %v1309 = vpack.c.b16 %v1277, %v1273
    %v1310 = vpack.c.b16 %v1278, %v1274
    %v1311 = vpack.c.b16 %v1279, %v1275
    %v1312 = vpack.c.b16 %v1280, %v1276
    %1345 = vmatpush.bf16.msra.mxu0 %v1309
    %1346 = vmatpush.bf16.msra.mxu0 %v1305
    %1347 = vmatpush.bf16.msra.mxu0 %v1301
    %1348 = vmatpush.bf16.msra.mxu0 %v1297
    %1349 = vmatpush.bf16.msra.mxu0 %v1293
    %1350 = vmatpush.bf16.msra.mxu0 %v1289
    %1351 = vmatpush.bf16.msra.mxu0 %v1285
    %1352 = vmatpush.bf16.msra.mxu0 %v1281
    %1353 = vmatmul.bf16.gmra.mxu0 %v1175
    %v1354 = vpop.f32.mrf.mxu0
    %v1355 = vadd.f32 %v1177, %v1354
    %v1356 = vpop.f32.mrf.mxu0
    %v1357 = vadd.f32 %v1177, %v1356
    %1358 = vdwg.mxu0
    %1359 = vmatpush.bf16.msra.mxu0 %v1310
    %1360 = vmatpush.bf16.msra.mxu0 %v1306
    %1361 = vmatpush.bf16.msra.mxu0 %v1302
    %1362 = vmatpush.bf16.msra.mxu0 %v1298
    %1363 = vmatpush.bf16.msra.mxu0 %v1294
    %1364 = vmatpush.bf16.msra.mxu0 %v1290
    %1365 = vmatpush.bf16.msra.mxu0 %v1286
    %1366 = vmatpush.bf16.msra.mxu0 %v1282
    %1367 = vmatmul.bf16.gmra.mxu0 %v1175
    %v1368 = vpop.f32.mrf.mxu0
    %v1369 = vadd.f32 %v1178, %v1368
    %v1370 = vpop.f32.mrf.mxu0
    %v1371 = vadd.f32 %v1178, %v1370
    %1372 = vdwg.mxu0
    %1373 = vmatpush.bf16.msra.mxu0 %v1311
    %1374 = vmatpush.bf16.msra.mxu0 %v1307
    %1375 = vmatpush.bf16.msra.mxu0 %v1303
    %1376 = vmatpush.bf16.msra.mxu0 %v1299
    %1377 = vmatpush.bf16.msra.mxu0 %v1295
    %1378 = vmatpush.bf16.msra.mxu0 %v1291
    %1379 = vmatpush.bf16.msra.mxu0 %v1287
    %1380 = vmatpush.bf16.msra.mxu0 %v1283
    %1381 = vmatmul.bf16.gmra.mxu0 %v1175
    %v1382 = vpop.f32.mrf.mxu0
    %v1383 = vadd.f32 %v1179, %v1382
    %v1384 = vpop.f32.mrf.mxu0
    %v1385 = vadd.f32 %v1179, %v1384
    %1386 = vdwg.mxu0
    %1387 = vmatpush.bf16.msra.mxu0 %v1312
    %1388 = vmatpush.bf16.msra.mxu0 %v1308
    %1389 = vmatpush.bf16.msra.mxu0 %v1304
    %1390 = vmatpush.bf16.msra.mxu0 %v1300
    %1391 = vmatpush.bf16.msra.mxu0 %v1296
    %1392 = vmatpush.bf16.msra.mxu0 %v1292
    %1393 = vmatpush.bf16.msra.mxu0 %v1288
    %1394 = vmatpush.bf16.msra.mxu0 %v1284
    %1395 = vmatmul.bf16.gmra.mxu0 %v1175
    %v1396 = vpop.f32.mrf.mxu0
    %v1397 = vadd.f32 %v1180, %v1396
    %v1398 = vpop.f32.mrf.mxu0
    %v1399 = vadd.f32 %v1180, %v1398
    %1400 = vdwg.mxu0
    %v1401 = vmul.f32 %v1355, 0.5
    %v1402 = vmul.f32 %v1369, 0.5
    %v1403 = vmul.f32 %v1383, 0.5
    %v1404 = vmul.f32 %v1397, 0.5
    %v1405 = vmul.f32 %v1357, 0.5
    %v1406 = vmul.f32 %v1371, 0.5
    %v1407 = vmul.f32 %v1385, 0.5
    %v1408 = vmul.f32 %v1399, 0.5
    %v1409 = vmul.f32 %v1355, 0.70710677
    %v1410 = vmul.f32 %v1369, 0.70710677
    %v1411 = vmul.f32 %v1383, 0.70710677
    %v1412 = vmul.f32 %v1397, 0.70710677
    %v1413 = vmul.f32 %v1357, 0.70710677
    %v1414 = vmul.f32 %v1371, 0.70710677
    %v1415 = vmul.f32 %v1385, 0.70710677
    %v1416 = vmul.f32 %v1399, 0.70710677
    %v1417 = vmul.f32 %v1409, %v1409
    %v1418 = vmin.f32 16.0, %v1417
    %v1419 = vmul.f32 %v1418, 2.1237322e-06
    %v1420 = vadd.f32 %v1419, 0.00028619796
    %v1421 = vmul.f32 %v1418, %v1420
    %v1422 = vadd.f32 %v1421, 0.0036580483
    %v1423 = vmul.f32 %v1418, %v1422
    %v1424 = vadd.f32 %v1423, 0.05243302
    %v1425 = vmul.f32 %v1418, %v1424
    %v1426 = vadd.f32 %v1425, 0.18741608
    %v1427 = vmul.f32 %v1418, %v1426
    %v1428 = vadd.f32 %v1427, 1.1283791
    %v1429 = vmul.f32 %v1409, %v1428
    %v1430 = vmul.f32 %v1418, 3.8918573e-05
    %v1431 = vadd.f32 %v1430, 0.001143296
    %v1432 = vmul.f32 %v1418, %v1431
    %v1433 = vadd.f32 %v1432, 0.014752088
    %v1434 = vmul.f32 %v1418, %v1433
    %v1435 = vadd.f32 %v1434, 0.112945676
    %v1436 = vmul.f32 %v1418, %v1435
    %v1437 = vadd.f32 %v1436, 0.4994258
    %v1438 = vmul.f32 %v1418, %v1437
    %v1439 = vadd.f32 %v1438, 1.0
    %v1440 = vrcp.pop %v1439
    %v1441 = vmul.f32 %v1439, %v1440
    %v1442 = vsub.f32 1.0, %v1441
    %v1443 = vmul.f32 %v1440, %v1442
    %v1444 = vadd.f32 %v1440, %v1443
    %vm1445 = vweird.f32 %v1439
    %vm1446 = vweird.f32 %v1440
    %vm1447 = vmor %vm1445, %vm1446
    %v1448 = vsel %vm1447, %v1440, %v1444
    %v1449 = vand.u32 2147483647, %v1439
    %vm1450 = vcmp.eq.f32.partialorder %v1449, 8.507059e+37
    %v1451 = vand.u32 %v1439, 2147483648
    %v1452 = vor.u32 1.1754944e-38, %v1451
    %v1453 = vsel %vm1450, %v1452, %v1448
    %v1454 = vmul.f32 %v1429, %v1453
    %v1455 = vmin.f32 %v1454, 1.0
    %v1456 = vmax.f32 %v1455, -1.0
    %v1457 = vmul.f32 %v1410, %v1410
    %v1458 = vmin.f32 16.0, %v1457
    %v1459 = vmul.f32 %v1458, 2.1237322e-06
    %v1460 = vadd.f32 %v1459, 0.00028619796
    %v1461 = vmul.f32 %v1458, %v1460
    %v1462 = vadd.f32 %v1461, 0.0036580483
    %v1463 = vmul.f32 %v1458, %v1462
    %v1464 = vadd.f32 %v1463, 0.05243302
    %v1465 = vmul.f32 %v1458, %v1464
    %v1466 = vadd.f32 %v1465, 0.18741608
    %v1467 = vmul.f32 %v1458, %v1466
    %v1468 = vadd.f32 %v1467, 1.1283791
    %v1469 = vmul.f32 %v1410, %v1468
    %v1470 = vmul.f32 %v1458, 3.8918573e-05
    %v1471 = vadd.f32 %v1470, 0.001143296
    %v1472 = vmul.f32 %v1458, %v1471
    %v1473 = vadd.f32 %v1472, 0.014752088
    %v1474 = vmul.f32 %v1458, %v1473
    %v1475 = vadd.f32 %v1474, 0.112945676
    %v1476 = vmul.f32 %v1458, %v1475
    %v1477 = vadd.f32 %v1476, 0.4994258
    %v1478 = vmul.f32 %v1458, %v1477
    %v1479 = vadd.f32 %v1478, 1.0
    %v1480 = vrcp.pop %v1479
    %v1481 = vmul.f32 %v1479, %v1480
    %v1482 = vsub.f32 1.0, %v1481
    %v1483 = vmul.f32 %v1480, %v1482
    %v1484 = vadd.f32 %v1480, %v1483
    %vm1485 = vweird.f32 %v1479
    %vm1486 = vweird.f32 %v1480
    %vm1487 = vmor %vm1485, %vm1486
    %v1488 = vsel %vm1487, %v1480, %v1484
    %v1489 = vand.u32 2147483647, %v1479
    %vm1490 = vcmp.eq.f32.partialorder %v1489, 8.507059e+37
    %v1491 = vand.u32 %v1479, 2147483648
    %v1492 = vor.u32 1.1754944e-38, %v1491
    %v1493 = vsel %vm1490, %v1492, %v1488
    %v1494 = vmul.f32 %v1469, %v1493
    %v1495 = vmin.f32 %v1494, 1.0
    %v1496 = vmax.f32 %v1495, -1.0
    %v1497 = vmul.f32 %v1411, %v1411
    %v1498 = vmin.f32 16.0, %v1497
    %v1499 = vmul.f32 %v1498, 2.1237322e-06
    %v1500 = vadd.f32 %v1499, 0.00028619796
    %v1501 = vmul.f32 %v1498, %v1500
    %v1502 = vadd.f32 %v1501, 0.0036580483
    %v1503 = vmul.f32 %v1498, %v1502
    %v1504 = vadd.f32 %v1503, 0.05243302
    %v1505 = vmul.f32 %v1498, %v1504
    %v1506 = vadd.f32 %v1505, 0.18741608
    %v1507 = vmul.f32 %v1498, %v1506
    %v1508 = vadd.f32 %v1507, 1.1283791
    %v1509 = vmul.f32 %v1411, %v1508
    %v1510 = vmul.f32 %v1498, 3.8918573e-05
    %v1511 = vadd.f32 %v1510, 0.001143296
    %v1512 = vmul.f32 %v1498, %v1511
    %v1513 = vadd.f32 %v1512, 0.014752088
    %v1514 = vmul.f32 %v1498, %v1513
    %v1515 = vadd.f32 %v1514, 0.112945676
    %v1516 = vmul.f32 %v1498, %v1515
    %v1517 = vadd.f32 %v1516, 0.4994258
    %v1518 = vmul.f32 %v1498, %v1517
    %v1519 = vadd.f32 %v1518, 1.0
    %v1520 = vrcp.pop %v1519
    %v1521 = vmul.f32 %v1519, %v1520
    %v1522 = vsub.f32 1.0, %v1521
    %v1523 = vmul.f32 %v1520, %v1522
    %v1524 = vadd.f32 %v1520, %v1523
    %vm1525 = vweird.f32 %v1519
    %vm1526 = vweird.f32 %v1520
    %vm1527 = vmor %vm1525, %vm1526
    %v1528 = vsel %vm1527, %v1520, %v1524
    %v1529 = vand.u32 2147483647, %v1519
    %vm1530 = vcmp.eq.f32.partialorder %v1529, 8.507059e+37
    %v1531 = vand.u32 %v1519, 2147483648
    %v1532 = vor.u32 1.1754944e-38, %v1531
    %v1533 = vsel %vm1530, %v1532, %v1528
    %v1534 = vmul.f32 %v1509, %v1533
    %v1535 = vmin.f32 %v1534, 1.0
    %v1536 = vmax.f32 %v1535, -1.0
    %v1537 = vmul.f32 %v1412, %v1412
    %v1538 = vmin.f32 16.0, %v1537
    %v1539 = vmul.f32 %v1538, 2.1237322e-06
    %v1540 = vadd.f32 %v1539, 0.00028619796
    %v1541 = vmul.f32 %v1538, %v1540
    %v1542 = vadd.f32 %v1541, 0.0036580483
    %v1543 = vmul.f32 %v1538, %v1542
    %v1544 = vadd.f32 %v1543, 0.05243302
    %v1545 = vmul.f32 %v1538, %v1544
    %v1546 = vadd.f32 %v1545, 0.18741608
    %v1547 = vmul.f32 %v1538, %v1546
    %v1548 = vadd.f32 %v1547, 1.1283791
    %v1549 = vmul.f32 %v1412, %v1548
    %v1550 = vmul.f32 %v1538, 3.8918573e-05
    %v1551 = vadd.f32 %v1550, 0.001143296
    %v1552 = vmul.f32 %v1538, %v1551
    %v1553 = vadd.f32 %v1552, 0.014752088
    %v1554 = vmul.f32 %v1538, %v1553
    %v1555 = vadd.f32 %v1554, 0.112945676
    %v1556 = vmul.f32 %v1538, %v1555
    %v1557 = vadd.f32 %v1556, 0.4994258
    %v1558 = vmul.f32 %v1538, %v1557
    %v1559 = vadd.f32 %v1558, 1.0
    %v1560 = vrcp.pop %v1559
    %v1561 = vmul.f32 %v1559, %v1560
    %v1562 = vsub.f32 1.0, %v1561
    %v1563 = vmul.f32 %v1560, %v1562
    %v1564 = vadd.f32 %v1560, %v1563
    %vm1565 = vweird.f32 %v1559
    %vm1566 = vweird.f32 %v1560
    %vm1567 = vmor %vm1565, %vm1566
    %v1568 = vsel %vm1567, %v1560, %v1564
    %v1569 = vand.u32 2147483647, %v1559
    %vm1570 = vcmp.eq.f32.partialorder %v1569, 8.507059e+37
    %v1571 = vand.u32 %v1559, 2147483648
    %v1572 = vor.u32 1.1754944e-38, %v1571
    %v1573 = vsel %vm1570, %v1572, %v1568
    %v1574 = vmul.f32 %v1549, %v1573
    %v1575 = vmin.f32 %v1574, 1.0
    %v1576 = vmax.f32 %v1575, -1.0
    %v1577 = vmul.f32 %v1413, %v1413
    %v1578 = vmin.f32 16.0, %v1577
    %v1579 = vmul.f32 %v1578, 2.1237322e-06
    %v1580 = vadd.f32 %v1579, 0.00028619796
    %v1581 = vmul.f32 %v1578, %v1580
    %v1582 = vadd.f32 %v1581, 0.0036580483
    %v1583 = vmul.f32 %v1578, %v1582
    %v1584 = vadd.f32 %v1583, 0.05243302
    %v1585 = vmul.f32 %v1578, %v1584
    %v1586 = vadd.f32 %v1585, 0.18741608
    %v1587 = vmul.f32 %v1578, %v1586
    %v1588 = vadd.f32 %v1587, 1.1283791
    %v1589 = vmul.f32 %v1413, %v1588
    %v1590 = vmul.f32 %v1578, 3.8918573e-05
    %v1591 = vadd.f32 %v1590, 0.001143296
    %v1592 = vmul.f32 %v1578, %v1591
    %v1593 = vadd.f32 %v1592, 0.014752088
    %v1594 = vmul.f32 %v1578, %v1593
    %v1595 = vadd.f32 %v1594, 0.112945676
    %v1596 = vmul.f32 %v1578, %v1595
    %v1597 = vadd.f32 %v1596, 0.4994258
    %v1598 = vmul.f32 %v1578, %v1597
    %v1599 = vadd.f32 %v1598, 1.0
    %v1600 = vrcp.pop %v1599
    %v1601 = vmul.f32 %v1599, %v1600
    %v1602 = vsub.f32 1.0, %v1601
    %v1603 = vmul.f32 %v1600, %v1602
    %v1604 = vadd.f32 %v1600, %v1603
    %vm1605 = vweird.f32 %v1599
    %vm1606 = vweird.f32 %v1600
    %vm1607 = vmor %vm1605, %vm1606
    %v1608 = vsel %vm1607, %v1600, %v1604
    %v1609 = vand.u32 2147483647, %v1599
    %vm1610 = vcmp.eq.f32.partialorder %v1609, 8.507059e+37
    %v1611 = vand.u32 %v1599, 2147483648
    %v1612 = vor.u32 1.1754944e-38, %v1611
    %v1613 = vsel %vm1610, %v1612, %v1608
    %v1614 = vmul.f32 %v1589, %v1613
    %v1615 = vmin.f32 %v1614, 1.0
    %v1616 = vmax.f32 %v1615, -1.0
    %v1617 = vmul.f32 %v1414, %v1414
    %v1618 = vmin.f32 16.0, %v1617
    %v1619 = vmul.f32 %v1618, 2.1237322e-06
    %v1620 = vadd.f32 %v1619, 0.00028619796
    %v1621 = vmul.f32 %v1618, %v1620
    %v1622 = vadd.f32 %v1621, 0.0036580483
    %v1623 = vmul.f32 %v1618, %v1622
    %v1624 = vadd.f32 %v1623, 0.05243302
    %v1625 = vmul.f32 %v1618, %v1624
    %v1626 = vadd.f32 %v1625, 0.18741608
    %v1627 = vmul.f32 %v1618, %v1626
    %v1628 = vadd.f32 %v1627, 1.1283791
    %v1629 = vmul.f32 %v1414, %v1628
    %v1630 = vmul.f32 %v1618, 3.8918573e-05
    %v1631 = vadd.f32 %v1630, 0.001143296
    %v1632 = vmul.f32 %v1618, %v1631
    %v1633 = vadd.f32 %v1632, 0.014752088
    %v1634 = vmul.f32 %v1618, %v1633
    %v1635 = vadd.f32 %v1634, 0.112945676
    %v1636 = vmul.f32 %v1618, %v1635
    %v1637 = vadd.f32 %v1636, 0.4994258
    %v1638 = vmul.f32 %v1618, %v1637
    %v1639 = vadd.f32 %v1638, 1.0
    %v1640 = vrcp.pop %v1639
    %v1641 = vmul.f32 %v1639, %v1640
    %v1642 = vsub.f32 1.0, %v1641
    %v1643 = vmul.f32 %v1640, %v1642
    %v1644 = vadd.f32 %v1640, %v1643
    %vm1645 = vweird.f32 %v1639
    %vm1646 = vweird.f32 %v1640
    %vm1647 = vmor %vm1645, %vm1646
    %v1648 = vsel %vm1647, %v1640, %v1644
    %v1649 = vand.u32 2147483647, %v1639
    %vm1650 = vcmp.eq.f32.partialorder %v1649, 8.507059e+37
    %v1651 = vand.u32 %v1639, 2147483648
    %v1652 = vor.u32 1.1754944e-38, %v1651
    %v1653 = vsel %vm1650, %v1652, %v1648
    %v1654 = vmul.f32 %v1629, %v1653
    %v1655 = vmin.f32 %v1654, 1.0
    %v1656 = vmax.f32 %v1655, -1.0
    %v1657 = vmul.f32 %v1415, %v1415
    %v1658 = vmin.f32 16.0, %v1657
    %v1659 = vmul.f32 %v1658, 2.1237322e-06
    %v1660 = vadd.f32 %v1659, 0.00028619796
    %v1661 = vmul.f32 %v1658, %v1660
    %v1662 = vadd.f32 %v1661, 0.0036580483
    %v1663 = vmul.f32 %v1658, %v1662
    %v1664 = vadd.f32 %v1663, 0.05243302
    %v1665 = vmul.f32 %v1658, %v1664
    %v1666 = vadd.f32 %v1665, 0.18741608
    %v1667 = vmul.f32 %v1658, %v1666
    %v1668 = vadd.f32 %v1667, 1.1283791
    %v1669 = vmul.f32 %v1415, %v1668
    %v1670 = vmul.f32 %v1658, 3.8918573e-05
    %v1671 = vadd.f32 %v1670, 0.001143296
    %v1672 = vmul.f32 %v1658, %v1671
    %v1673 = vadd.f32 %v1672, 0.014752088
    %v1674 = vmul.f32 %v1658, %v1673
    %v1675 = vadd.f32 %v1674, 0.112945676
    %v1676 = vmul.f32 %v1658, %v1675
    %v1677 = vadd.f32 %v1676, 0.4994258
    %v1678 = vmul.f32 %v1658, %v1677
    %v1679 = vadd.f32 %v1678, 1.0
    %v1680 = vrcp.pop %v1679
    %v1681 = vmul.f32 %v1679, %v1680
    %v1682 = vsub.f32 1.0, %v1681
    %v1683 = vmul.f32 %v1680, %v1682
    %v1684 = vadd.f32 %v1680, %v1683
    %vm1685 = vweird.f32 %v1679
    %vm1686 = vweird.f32 %v1680
    %vm1687 = vmor %vm1685, %vm1686
    %v1688 = vsel %vm1687, %v1680, %v1684
    %v1689 = vand.u32 2147483647, %v1679
    %vm1690 = vcmp.eq.f32.partialorder %v1689, 8.507059e+37
    %v1691 = vand.u32 %v1679, 2147483648
    %v1692 = vor.u32 1.1754944e-38, %v1691
    %v1693 = vsel %vm1690, %v1692, %v1688
    %v1694 = vmul.f32 %v1669, %v1693
    %v1695 = vmin.f32 %v1694, 1.0
    %v1696 = vmax.f32 %v1695, -1.0
    %v1697 = vmul.f32 %v1416, %v1416
    %v1698 = vmin.f32 16.0, %v1697
    %v1699 = vmul.f32 %v1698, 2.1237322e-06
    %v1700 = vadd.f32 %v1699, 0.00028619796
    %v1701 = vmul.f32 %v1698, %v1700
    %v1702 = vadd.f32 %v1701, 0.0036580483
    %v1703 = vmul.f32 %v1698, %v1702
    %v1704 = vadd.f32 %v1703, 0.05243302
    %v1705 = vmul.f32 %v1698, %v1704
    %v1706 = vadd.f32 %v1705, 0.18741608
    %v1707 = vmul.f32 %v1698, %v1706
    %v1708 = vadd.f32 %v1707, 1.1283791
    %v1709 = vmul.f32 %v1416, %v1708
    %v1710 = vmul.f32 %v1698, 3.8918573e-05
    %v1711 = vadd.f32 %v1710, 0.001143296
    %v1712 = vmul.f32 %v1698, %v1711
    %v1713 = vadd.f32 %v1712, 0.014752088
    %v1714 = vmul.f32 %v1698, %v1713
    %v1715 = vadd.f32 %v1714, 0.112945676
    %v1716 = vmul.f32 %v1698, %v1715
    %v1717 = vadd.f32 %v1716, 0.4994258
    %v1718 = vmul.f32 %v1698, %v1717
    %v1719 = vadd.f32 %v1718, 1.0
    %v1720 = vrcp.pop %v1719
    %v1721 = vmul.f32 %v1719, %v1720
    %v1722 = vsub.f32 1.0, %v1721
    %v1723 = vmul.f32 %v1720, %v1722
    %v1724 = vadd.f32 %v1720, %v1723
    %vm1725 = vweird.f32 %v1719
    %vm1726 = vweird.f32 %v1720
    %vm1727 = vmor %vm1725, %vm1726
    %v1728 = vsel %vm1727, %v1720, %v1724
    %v1729 = vand.u32 2147483647, %v1719
    %vm1730 = vcmp.eq.f32.partialorder %v1729, 8.507059e+37
    %v1731 = vand.u32 %v1719, 2147483648
    %v1732 = vor.u32 1.1754944e-38, %v1731
    %v1733 = vsel %vm1730, %v1732, %v1728
    %v1734 = vmul.f32 %v1709, %v1733
    %v1735 = vmin.f32 %v1734, 1.0
    %v1736 = vmax.f32 %v1735, -1.0
    %v1737 = vadd.f32 %v1456, 1.0
    %v1738 = vadd.f32 %v1496, 1.0
    %v1739 = vadd.f32 %v1536, 1.0
    %v1740 = vadd.f32 %v1576, 1.0
    %v1741 = vadd.f32 %v1616, 1.0
    %v1742 = vadd.f32 %v1656, 1.0
    %v1743 = vadd.f32 %v1696, 1.0
    %v1744 = vadd.f32 %v1736, 1.0
    %v1745 = vmul.f32 %v1401, %v1737
    %v1746 = vmul.f32 %v1402, %v1738
    %v1747 = vmul.f32 %v1403, %v1739
    %v1748 = vmul.f32 %v1404, %v1740
    %v1749 = vmul.f32 %v1405, %v1741
    %v1750 = vmul.f32 %v1406, %v1742
    %v1751 = vmul.f32 %v1407, %v1743
    %v1752 = vmul.f32 %v1408, %v1744
    %v1753 = vpack.c.bf16 %v1749, %v1745
    %v1754 = vpack.c.bf16 %v1750, %v1746
    %v1755 = vpack.c.bf16 %v1751, %v1747
    %v1756 = vpack.c.bf16 %v1752, %v1748
    %v1758 = vperm.slane %v298, 0
    %v1824 = vunpack.c.l.b16 %v234
    %v1825 = vunpack.c.l.b16 %v235
    %v1826 = vunpack.c.l.b16 %v236
    %v1827 = vunpack.c.l.b16 %v237
    %v1828 = vunpack.c.l.b16 %v238
    %v1829 = vunpack.c.l.b16 %v239
    %v1830 = vunpack.c.l.b16 %v240
    %v1831 = vunpack.c.l.b16 %v241
    %v1832 = vunpack.c.l.b16 %v242
    %v1833 = vunpack.c.l.b16 %v243
    %v1834 = vunpack.c.l.b16 %v244
    %v1835 = vunpack.c.l.b16 %v245
    %v1836 = vunpack.c.l.b16 %v246
    %v1837 = vunpack.c.l.b16 %v247
    %v1838 = vunpack.c.l.b16 %v248
    %v1839 = vunpack.c.l.b16 %v249
    %v1840 = vunpack.c.l.b16 %v250
    %v1841 = vunpack.c.l.b16 %v251
    %v1842 = vunpack.c.l.b16 %v252
    %v1843 = vunpack.c.l.b16 %v253
    %v1844 = vunpack.c.l.b16 %v254
    %v1845 = vunpack.c.l.b16 %v255
    %v1846 = vunpack.c.l.b16 %v256
    %v1847 = vunpack.c.l.b16 %v257
    %v1848 = vunpack.c.l.b16 %v258
    %v1849 = vunpack.c.l.b16 %v259
    %v1850 = vunpack.c.l.b16 %v260
    %v1851 = vunpack.c.l.b16 %v261
    %v1852 = vunpack.c.l.b16 %v262
    %v1853 = vunpack.c.l.b16 %v263
    %v1854 = vunpack.c.l.b16 %v264
    %v1855 = vunpack.c.l.b16 %v265
    %v1856 = vunpack.c.l.b16 %v266
    %v1857 = vunpack.c.l.b16 %v267
    %v1858 = vunpack.c.l.b16 %v268
    %v1859 = vunpack.c.l.b16 %v269
    %v1860 = vunpack.c.l.b16 %v270
    %v1861 = vunpack.c.l.b16 %v271
    %v1862 = vunpack.c.l.b16 %v272
    %v1863 = vunpack.c.l.b16 %v273
    %v1864 = vunpack.c.l.b16 %v274
    %v1865 = vunpack.c.l.b16 %v275
    %v1866 = vunpack.c.l.b16 %v276
    %v1867 = vunpack.c.l.b16 %v277
    %v1868 = vunpack.c.l.b16 %v278
    %v1869 = vunpack.c.l.b16 %v279
    %v1870 = vunpack.c.l.b16 %v280
    %v1871 = vunpack.c.l.b16 %v281
    %v1872 = vunpack.c.l.b16 %v282
    %v1873 = vunpack.c.l.b16 %v283
    %v1874 = vunpack.c.l.b16 %v284
    %v1875 = vunpack.c.l.b16 %v285
    %v1876 = vunpack.c.l.b16 %v286
    %v1877 = vunpack.c.l.b16 %v287
    %v1878 = vunpack.c.l.b16 %v288
    %v1879 = vunpack.c.l.b16 %v289
    %v1880 = vunpack.c.l.b16 %v290
    %v1881 = vunpack.c.l.b16 %v291
    %v1882 = vunpack.c.l.b16 %v292
    %v1883 = vunpack.c.l.b16 %v293
    %v1884 = vunpack.c.l.b16 %v294
    %v1885 = vunpack.c.l.b16 %v295
    %v1886 = vunpack.c.l.b16 %v296
    %v1887 = vunpack.c.l.b16 %v297
    %v1888 = vpack.c.b16 %v1825, %v1824
    %v1889 = vpack.c.b16 %v1827, %v1826
    %v1890 = vpack.c.b16 %v1829, %v1828
    %v1891 = vpack.c.b16 %v1831, %v1830
    %v1892 = vpack.c.b16 %v1833, %v1832
    %v1893 = vpack.c.b16 %v1835, %v1834
    %v1894 = vpack.c.b16 %v1837, %v1836
    %v1895 = vpack.c.b16 %v1839, %v1838
    %v1896 = vpack.c.b16 %v1841, %v1840
    %v1897 = vpack.c.b16 %v1843, %v1842
    %v1898 = vpack.c.b16 %v1845, %v1844
    %v1899 = vpack.c.b16 %v1847, %v1846
    %v1900 = vpack.c.b16 %v1849, %v1848
    %v1901 = vpack.c.b16 %v1851, %v1850
    %v1902 = vpack.c.b16 %v1853, %v1852
    %v1903 = vpack.c.b16 %v1855, %v1854
    %v1904 = vpack.c.b16 %v1857, %v1856
    %v1905 = vpack.c.b16 %v1859, %v1858
    %v1906 = vpack.c.b16 %v1861, %v1860
    %v1907 = vpack.c.b16 %v1863, %v1862
    %v1908 = vpack.c.b16 %v1865, %v1864
    %v1909 = vpack.c.b16 %v1867, %v1866
    %v1910 = vpack.c.b16 %v1869, %v1868
    %v1911 = vpack.c.b16 %v1871, %v1870
    %v1912 = vpack.c.b16 %v1873, %v1872
    %v1913 = vpack.c.b16 %v1875, %v1874
    %v1914 = vpack.c.b16 %v1877, %v1876
    %v1915 = vpack.c.b16 %v1879, %v1878
    %v1916 = vpack.c.b16 %v1881, %v1880
    %v1917 = vpack.c.b16 %v1883, %v1882
    %v1918 = vpack.c.b16 %v1885, %v1884
    %v1919 = vpack.c.b16 %v1887, %v1886
    %1952 = vmatpush.bf16.msra.mxu0 %v1895
    %1953 = vmatpush.bf16.msra.mxu0 %v1894
    %1954 = vmatpush.bf16.msra.mxu0 %v1893
    %1955 = vmatpush.bf16.msra.mxu0 %v1892
    %1956 = vmatpush.bf16.msra.mxu0 %v1891
    %1957 = vmatpush.bf16.msra.mxu0 %v1890
    %1958 = vmatpush.bf16.msra.mxu0 %v1889
    %1959 = vmatpush.bf16.msra.mxu0 %v1888
    %1960 = vmatmul.bf16.gmra.mxu0 %v1753
    %v1961 = vpop.f32.mrf.mxu0
    %v1962 = vadd.f32 %v1758, %v1961
    %v1963 = vpop.f32.mrf.mxu0
    %v1964 = vadd.f32 %v1758, %v1963
    %1965 = vdwg.mxu0
    %1966 = vmatpush.bf16.msra.mxu0 %v1903
    %1967 = vmatpush.bf16.msra.mxu0 %v1902
    %1968 = vmatpush.bf16.msra.mxu0 %v1901
    %1969 = vmatpush.bf16.msra.mxu0 %v1900
    %1970 = vmatpush.bf16.msra.mxu0 %v1899
    %1971 = vmatpush.bf16.msra.mxu0 %v1898
    %1972 = vmatpush.bf16.msra.mxu0 %v1897
    %1973 = vmatpush.bf16.msra.mxu0 %v1896
    %1974 = vmatmul.bf16.gmra.mxu0 %v1754
    %v1975 = vpop.f32.mrf.mxu0
    %v1976 = vadd.f32 %v1962, %v1975
    %v1977 = vpop.f32.mrf.mxu0
    %v1978 = vadd.f32 %v1964, %v1977
    %1979 = vdwg.mxu0
    %1980 = vmatpush.bf16.msra.mxu0 %v1911
    %1981 = vmatpush.bf16.msra.mxu0 %v1910
    %1982 = vmatpush.bf16.msra.mxu0 %v1909
    %1983 = vmatpush.bf16.msra.mxu0 %v1908
    %1984 = vmatpush.bf16.msra.mxu0 %v1907
    %1985 = vmatpush.bf16.msra.mxu0 %v1906
    %1986 = vmatpush.bf16.msra.mxu0 %v1905
    %1987 = vmatpush.bf16.msra.mxu0 %v1904
    %1988 = vmatmul.bf16.gmra.mxu0 %v1755
    %v1989 = vpop.f32.mrf.mxu0
    %v1990 = vadd.f32 %v1976, %v1989
    %v1991 = vpop.f32.mrf.mxu0
    %v1992 = vadd.f32 %v1978, %v1991
    %1993 = vdwg.mxu0
    %1994 = vmatpush.bf16.msra.mxu0 %v1919
    %1995 = vmatpush.bf16.msra.mxu0 %v1918
    %1996 = vmatpush.bf16.msra.mxu0 %v1917
    %1997 = vmatpush.bf16.msra.mxu0 %v1916
    %1998 = vmatpush.bf16.msra.mxu0 %v1915
    %1999 = vmatpush.bf16.msra.mxu0 %v1914
    %2000 = vmatpush.bf16.msra.mxu0 %v1913
    %2001 = vmatpush.bf16.msra.mxu0 %v1912
    %2002 = vmatmul.bf16.gmra.mxu0 %v1756
    %v2003 = vpop.f32.mrf.mxu0
    %v2004 = vadd.f32 %v1990, %v2003
    %v2005 = vpop.f32.mrf.mxu0
    %v2006 = vadd.f32 %v1992, %v2005
    %2007 = vdwg.mxu0
    %v2008 = vadd.f32 %v1123, %v2004
    %v2009 = vadd.f32 %v1124, %v2006
    %2010 = vst [vmem:[#allocation14] sm:$0xff] %v2008
    %2011 = vst [vmem:[#allocation14 + $0x8] sm:$0xff] %v2009
    // Predicated region
    $region78: #{tpu_custom_call.1} parent=1 // pred_check
      _
    $region79: #{tpu_custom_call.1} parent=1 // pred_check_branch
      %2013 = sbr.rel (0) target = $region81
    $region80: #{tpu_custom_call.1} parent=1 // pred_region
      %2015 = vsyncadd [#allocation4], 0
      %s2016 = sshll.u32 [#allocation14], 4
      %s2017 = int_to_ptr.vmem [resolvable:$true] %s2016
      %s2018 = sshll.u32 %s12, 4
      %s2019 = int_to_ptr.hbm [resolvable:$true] %s2018
      %2024 = dma.vmem_to_hbm [thread:$0]  %s2017, 256, %s2019, [#allocation4], 128, 128, 8
    $region81: #{tpu_custom_call.1} parent=1 // pred_fallthru
      _
    // Predicated region
    $region82: #{tpu_custom_call.1} parent=1 // pred_check
      _
    $region83: #{tpu_custom_call.1} parent=1 // pred_check_branch
      %2026 = sbr.rel (0) target = $region85
    $region84: #{tpu_custom_call.1} parent=1 // pred_region
      %2028 = dma.done [#allocation4], 256
    $region85: #{tpu_custom_call.1} parent=1 // pred_fallthru
      _
    %2029 = vsyncpa [#allocation3], 1
    %2030 = vsyncpa [#allocation6], 1
    %2031 = vsyncpa [#allocation9], 1
    %2032 = vsyncpa [#allocation12], 1
    %2033 = vsyncpa [#allocation4], 1

</llo_original>
